<compile_context>
chip_gen: v5e
topology: v5e:2x2
jax: 0.10.0
libtpu: 0.0.40
codegen_flags: <defaults>
</compile_context>

<pallas_src>
import jax
import jax.numpy as jnp
from jax.experimental import pallas as pl
from jax.experimental.pallas import tpu as pltpu

IN_FEATURES = 28 * 28
HIDDEN = 64
HIDDEN_PAD = 128      # hidden width padded to a full lane/MXU width
NUM_CLASSES = 10


def mlp_kernel(x_ref, w1_ref, b1_ref, w2_ref, b2_ref, w3_ref, b3_ref,
               w4_ref, b4_ref, out_ref):
    # In-kernel cast to bf16 (no-op if x is already bf16) -- avoids a separate
    # XLA convert pass that would re-read/write x through HBM.
    x = x_ref[...].astype(jnp.bfloat16)
    # fc1 + relu  (bf16 operands, f32 accumulation on the MXU)
    h = jnp.dot(x, w1_ref[...], preferred_element_type=jnp.float32)
    h = jnp.maximum(h + b1_ref[...], 0.0)
    # fc2 + relu
    h = jnp.dot(h.astype(jnp.bfloat16), w2_ref[...],
                preferred_element_type=jnp.float32)
    h = jnp.maximum(h + b2_ref[...], 0.0)
    # fc3 + relu
    h = jnp.dot(h.astype(jnp.bfloat16), w3_ref[...],
                preferred_element_type=jnp.float32)
    h = jnp.maximum(h + b3_ref[...], 0.0)
    # fc4 (no activation)
    logits = jnp.dot(h.astype(jnp.bfloat16), w4_ref[...],
                     preferred_element_type=jnp.float32)
    logits = logits + b4_ref[...]
    # log_softmax over dim=1 (numerically stable, all f32)
    m = jnp.max(logits, axis=1, keepdims=True)
    shifted = logits - m
    lse = jnp.log(jnp.sum(jnp.exp(shifted), axis=1, keepdims=True))
    out_ref[...] = (shifted - lse).astype(out_ref.dtype)


def _round_up(a, m):
    return (a + m - 1) // m * m


def _choose_tb(batch, *, tb_max=1024, min_tile=256, min_tiles=2):
    """Adaptive batch tile.

    Small batches: one exact-size tile (rounded to 8 sublanes) -- no wasted
    DMA/compute.  Large batches: tiles of up to tb_max rows with an even
    number (>= min_tiles) of grid steps so the v7x megacore can shard them.
    """
    b8 = _round_up(batch, 8)
    if b8 < min_tile * min_tiles:
        return b8
    n = _round_up(max(min_tiles, -(-b8 // tb_max)), 2)
    return _round_up(-(-b8 // n), 8)


def _resident_spec(shape):
    # Constant block index: operand is fetched once and stays VMEM-resident
    # across all batch-grid iterations; single-buffer it (no need for the
    # default double buffer on a never-changing block).
    index_map = lambda i: (0,) * len(shape)
    try:
        return pl.BlockSpec(shape, index_map, pipeline_mode=pl.Buffered(1))
    except (AttributeError, TypeError):      # older pallas without Buffered
        return pl.BlockSpec(shape, index_map)


def net_forward(x, params, *, tb=None):
    """x: [B, 784] float32 or bfloat16. params: padded (hidden=128) weights."""
    B = x.shape[0]
    if tb is None:
        tb = _choose_tb(B)
    n_tiles = pl.cdiv(B, tb)
    Bp = n_tiles * tb
    if Bp != B:
        x = jnp.pad(x, ((0, Bp - B), (0, 0)))

    w1, w2, w3, w4 = params["w1"], params["w2"], params["w3"], params["w4"]

    flops = 2 * Bp * (IN_FEATURES * HIDDEN_PAD
                      + 2 * HIDDEN_PAD * HIDDEN_PAD
                      + HIDDEN_PAD * NUM_CLASSES)
    transcendentals = Bp * (NUM_CLASSES + 1)               # exp per class + log
    w_bytes = sum(int(params[k].size) * params[k].dtype.itemsize
                  for k in ("w1", "w2", "w3", "w4", "b1", "b2", "b3", "b4"))
    bytes_accessed = (Bp * IN_FEATURES * x.dtype.itemsize   # x read (f32 or bf16)
                      + w_bytes
                      + Bp * NUM_CLASSES * 4)               # output write

    grid_spec = pltpu.PrefetchScalarGridSpec(
        num_scalar_prefetch=0,
        grid=(n_tiles,),
        in_specs=[
            pl.BlockSpec((tb, IN_FEATURES), lambda i: (i, 0)),   # x tile (pipelined)
            _resident_spec((IN_FEATURES, HIDDEN_PAD)),           # w1
            _resident_spec((1, HIDDEN_PAD)),                     # b1
            _resident_spec((HIDDEN_PAD, HIDDEN_PAD)),            # w2
            _resident_spec((1, HIDDEN_PAD)),                     # b2
            _resident_spec((HIDDEN_PAD, HIDDEN_PAD)),            # w3
            _resident_spec((1, HIDDEN_PAD)),                     # b3
            _resident_spec((HIDDEN_PAD, NUM_CLASSES)),           # w4
            _resident_spec((1, NUM_CLASSES)),                    # b4
        ],
        out_specs=pl.BlockSpec((tb, NUM_CLASSES), lambda i: (i, 0)),
    )

    out = pl.pallas_call(
        mlp_kernel,
        out_shape=jax.ShapeDtypeStruct((Bp, NUM_CLASSES), jnp.float32),
        grid_spec=grid_spec,
        compiler_params=pltpu.CompilerParams(
            dimension_semantics=("parallel",),
            vmem_limit_bytes=32 * 1024 * 1024),
        cost_estimate=pl.CostEstimate(flops=flops,
                                      transcendentals=transcendentals,
                                      bytes_accessed=bytes_accessed),
    )(x, w1, params["b1"], w2, params["b2"], w3, params["b3"], w4, params["b4"])

    return out[:B]


def init_params(key):
    """PyTorch nn.Linear-style init (U[-1/sqrt(fan_in), +1/sqrt(fan_in)]).

    Weights are stored pre-transposed as [in, out] so the kernel computes x @ W.
    """
    dims = [(IN_FEATURES, HIDDEN), (HIDDEN, HIDDEN),
            (HIDDEN, HIDDEN), (HIDDEN, NUM_CLASSES)]
    raw = {}
    keys = jax.random.split(key, 2 * len(dims))
    for i, (fan_in, fan_out) in enumerate(dims):
        bound = 1.0 / jnp.sqrt(jnp.float32(fan_in))
        raw[f"w{i + 1}"] = jax.random.uniform(
            keys[2 * i], (fan_in, fan_out), minval=-bound, maxval=bound,
            dtype=jnp.float32)
        raw[f"b{i + 1}"] = jax.random.uniform(
            keys[2 * i + 1], (1, fan_out), minval=-bound, maxval=bound,
            dtype=jnp.float32)
    return raw


def pad_params(raw):
    """Zero-pad hidden width 64 -> 128 and cast weights to bf16 ONCE.

    Exactly semantics-preserving: padded weight columns and biases are 0 =>
    ReLU(0) = 0 => padded hidden units contribute nothing downstream.
    Biases stay f32 (added to the f32 MXU accumulator)."""
    def pad_to(a, rows, cols):
        return jnp.pad(a, ((0, rows - a.shape[0]), (0, cols - a.shape[1])))
    return {
        "w1": pad_to(raw["w1"], IN_FEATURES, HIDDEN_PAD).astype(jnp.bfloat16),
        "b1": pad_to(raw["b1"], 1, HIDDEN_PAD),
        "w2": pad_to(raw["w2"], HIDDEN_PAD, HIDDEN_PAD).astype(jnp.bfloat16),
        "b2": pad_to(raw["b2"], 1, HIDDEN_PAD),
        "w3": pad_to(raw["w3"], HIDDEN_PAD, HIDDEN_PAD).astype(jnp.bfloat16),
        "b3": pad_to(raw["b3"], 1, HIDDEN_PAD),
        "w4": pad_to(raw["w4"], HIDDEN_PAD, NUM_CLASSES).astype(jnp.bfloat16),
        "b4": raw["b4"],
    }


def reference_forward_f32(x, raw):
    """Pure-f32 JAX reference (matches the PyTorch module exactly)."""
    h = jax.nn.relu(x @ raw["w1"] + raw["b1"])
    h = jax.nn.relu(h @ raw["w2"] + raw["b2"])
    h = jax.nn.relu(h @ raw["w3"] + raw["b3"])
    logits = h @ raw["w4"] + raw["b4"]
    return jax.nn.log_softmax(logits, axis=1)


def reference_forward_bf16(x, raw):
    """JAX reference with the same bf16-operand / f32-accumulate matmuls."""
    def dense(h, w, b):
        return jnp.dot(h.astype(jnp.bfloat16), w.astype(jnp.bfloat16),
                       preferred_element_type=jnp.float32) + b
    h = jax.nn.relu(dense(x, raw["w1"], raw["b1"]))
    h = jax.nn.relu(dense(h, raw["w2"], raw["b2"]))
    h = jax.nn.relu(dense(h, raw["w3"], raw["b3"]))
    logits = dense(h, raw["w4"], raw["b4"])
    return jax.nn.log_softmax(logits, axis=1)


if __name__ == "__main__":
    key = jax.random.PRNGKey(0)
    pkey, xkey = jax.random.split(key)
    raw_params = init_params(pkey)
    params = pad_params(raw_params)

    # B=512: exercises the multi-tile (2 x 256) pipelined path.
    # B=8:   exercises the small-batch exact-size tile path (no 8->256 pad).
    for B in (512, 8):
        x = jax.random.normal(jax.random.fold_in(xkey, B),
                              (B, IN_FEATURES), dtype=jnp.float32)
        out = jax.block_until_ready(net_forward(x, params))
        assert out.shape == (B, NUM_CLASSES)

        ref_bf16 = reference_forward_bf16(x, raw_params)
        ref_f32 = reference_forward_f32(x, raw_params)
        assert jnp.allclose(out, ref_bf16, atol=2e-3, rtol=2e-3), \
            "mismatch vs bf16-matmul reference"
        assert jnp.allclose(out, ref_f32, atol=5e-2, rtol=5e-2), \
            "mismatch vs f32 reference"
        # log_softmax rows should exp-sum to ~1
        assert jnp.allclose(jnp.sum(jnp.exp(out), axis=1), 1.0, atol=1e-4)

    # Native-bf16 input path (best on v5e): no wrapper-side conversion at all.
    xb16 = jax.random.normal(jax.random.fold_in(xkey, 99),
                             (64, IN_FEATURES), dtype=jnp.float32
                             ).astype(jnp.bfloat16)
    out_b16 = jax.block_until_ready(net_forward(xb16, params))
    ref_b16 = reference_forward_bf16(xb16.astype(jnp.float32), raw_params)
    assert jnp.allclose(out_b16, ref_b16, atol=2e-3, rtol=2e-3), \
        "mismatch on native-bf16 input path"

    print("KERNEL_OK")
</pallas_src>

<mosaic_0001>
module attributes {stable_mosaic.version = 11 : i64} {
  func.func @mlp_kernel(%arg0: i32, %arg1: memref<256x784xf32, #tpu.memory_space<vmem>>, %arg2: memref<784x128xbf16, #tpu.memory_space<vmem>>, %arg3: memref<1x128xf32, #tpu.memory_space<vmem>>, %arg4: memref<128x128xbf16, #tpu.memory_space<vmem>>, %arg5: memref<1x128xf32, #tpu.memory_space<vmem>>, %arg6: memref<128x128xbf16, #tpu.memory_space<vmem>>, %arg7: memref<1x128xf32, #tpu.memory_space<vmem>>, %arg8: memref<128x10xbf16, #tpu.memory_space<vmem>>, %arg9: memref<1x10xf32, #tpu.memory_space<vmem>>, %arg10: memref<256x10xf32, #tpu.memory_space<vmem>>) attributes {dimension_semantics = [#tpu.dimension_semantics<parallel>], iteration_bounds = array<i64: 2>, scalar_prefetch = 0 : i64, scratch_operands = 0 : i64, tpu.core_type = #tpu.core_type<tc>, window_params = [{transform_indices = @transform_0, window_bounds = array<i64: 256, 784>}, {pipeline_mode = #tpu.pipeline_mode<synchronous>, transform_indices = @transform_1, window_bounds = array<i64: 784, 128>}, {pipeline_mode = #tpu.pipeline_mode<synchronous>, transform_indices = @transform_2, window_bounds = array<i64: 1, 128>}, {pipeline_mode = #tpu.pipeline_mode<synchronous>, transform_indices = @transform_3, window_bounds = array<i64: 128, 128>}, {pipeline_mode = #tpu.pipeline_mode<synchronous>, transform_indices = @transform_4, window_bounds = array<i64: 1, 128>}, {pipeline_mode = #tpu.pipeline_mode<synchronous>, transform_indices = @transform_5, window_bounds = array<i64: 128, 128>}, {pipeline_mode = #tpu.pipeline_mode<synchronous>, transform_indices = @transform_6, window_bounds = array<i64: 1, 128>}, {pipeline_mode = #tpu.pipeline_mode<synchronous>, transform_indices = @transform_7, window_bounds = array<i64: 128, 10>}, {pipeline_mode = #tpu.pipeline_mode<synchronous>, transform_indices = @transform_8, window_bounds = array<i64: 1, 10>}, {transform_indices = @transform_9, window_bounds = array<i64: 256, 10>}]} {
    %c0 = arith.constant 0 : index
    %c0_0 = arith.constant 0 : index
    %0 = vector.load %arg1[%c0, %c0_0] : memref<256x784xf32, #tpu.memory_space<vmem>>, vector<256x784xf32>
    %1 = arith.truncf %0 : vector<256x784xf32> to vector<256x784xbf16>
    %c0_1 = arith.constant 0 : index
    %c0_2 = arith.constant 0 : index
    %2 = vector.load %arg2[%c0_1, %c0_2] : memref<784x128xbf16, #tpu.memory_space<vmem>>, vector<784x128xbf16>
    %cst = arith.constant dense<0.000000e+00> : vector<256x128xf32>
    %3 = tpu.matmul %1, %2, %cst {dimension_numbers = #tpu.dot_dimension_numbers<[1], [0], [0], [1], [0, 0, 1, 1], [], []>} : vector<256x784xbf16>, vector<784x128xbf16>, vector<256x128xf32> -> vector<256x128xf32>
    %c0_3 = arith.constant 0 : index
    %c0_4 = arith.constant 0 : index
    %4 = vector.load %arg3[%c0_3, %c0_4] : memref<1x128xf32, #tpu.memory_space<vmem>>, vector<1x128xf32>
    %5 = vector.broadcast %4 : vector<1x128xf32> to vector<256x128xf32>
    %6 = arith.addf %3, %5 : vector<256x128xf32>
    %cst_5 = arith.constant 0.000000e+00 : f32
    %7 = vector.broadcast %cst_5 : f32 to vector<256x128xf32>
    %8 = arith.maximumf %6, %7 : vector<256x128xf32>
    %9 = arith.truncf %8 : vector<256x128xf32> to vector<256x128xbf16>
    %c0_6 = arith.constant 0 : index
    %c0_7 = arith.constant 0 : index
    %10 = vector.load %arg4[%c0_6, %c0_7] : memref<128x128xbf16, #tpu.memory_space<vmem>>, vector<128x128xbf16>
    %cst_8 = arith.constant dense<0.000000e+00> : vector<256x128xf32>
    %11 = tpu.matmul %9, %10, %cst_8 {dimension_numbers = #tpu.dot_dimension_numbers<[1], [0], [0], [1], [0, 0, 1, 1], [], []>} : vector<256x128xbf16>, vector<128x128xbf16>, vector<256x128xf32> -> vector<256x128xf32>
    %c0_9 = arith.constant 0 : index
    %c0_10 = arith.constant 0 : index
    %12 = vector.load %arg5[%c0_9, %c0_10] : memref<1x128xf32, #tpu.memory_space<vmem>>, vector<1x128xf32>
    %13 = vector.broadcast %12 : vector<1x128xf32> to vector<256x128xf32>
    %14 = arith.addf %11, %13 : vector<256x128xf32>
    %cst_11 = arith.constant 0.000000e+00 : f32
    %15 = vector.broadcast %cst_11 : f32 to vector<256x128xf32>
    %16 = arith.maximumf %14, %15 : vector<256x128xf32>
    %17 = arith.truncf %16 : vector<256x128xf32> to vector<256x128xbf16>
    %c0_12 = arith.constant 0 : index
    %c0_13 = arith.constant 0 : index
    %18 = vector.load %arg6[%c0_12, %c0_13] : memref<128x128xbf16, #tpu.memory_space<vmem>>, vector<128x128xbf16>
    %cst_14 = arith.constant dense<0.000000e+00> : vector<256x128xf32>
    %19 = tpu.matmul %17, %18, %cst_14 {dimension_numbers = #tpu.dot_dimension_numbers<[1], [0], [0], [1], [0, 0, 1, 1], [], []>} : vector<256x128xbf16>, vector<128x128xbf16>, vector<256x128xf32> -> vector<256x128xf32>
    %c0_15 = arith.constant 0 : index
    %c0_16 = arith.constant 0 : index
    %20 = vector.load %arg7[%c0_15, %c0_16] : memref<1x128xf32, #tpu.memory_space<vmem>>, vector<1x128xf32>
    %21 = vector.broadcast %20 : vector<1x128xf32> to vector<256x128xf32>
    %22 = arith.addf %19, %21 : vector<256x128xf32>
    %cst_17 = arith.constant 0.000000e+00 : f32
    %23 = vector.broadcast %cst_17 : f32 to vector<256x128xf32>
    %24 = arith.maximumf %22, %23 : vector<256x128xf32>
    %25 = arith.truncf %24 : vector<256x128xf32> to vector<256x128xbf16>
    %c0_18 = arith.constant 0 : index
    %c0_19 = arith.constant 0 : index
    %26 = vector.load %arg8[%c0_18, %c0_19] : memref<128x10xbf16, #tpu.memory_space<vmem>>, vector<128x10xbf16>
    %cst_20 = arith.constant dense<0.000000e+00> : vector<256x10xf32>
    %27 = tpu.matmul %25, %26, %cst_20 {dimension_numbers = #tpu.dot_dimension_numbers<[1], [0], [0], [1], [0, 0, 1, 1], [], []>} : vector<256x128xbf16>, vector<128x10xbf16>, vector<256x10xf32> -> vector<256x10xf32>
    %c0_21 = arith.constant 0 : index
    %c0_22 = arith.constant 0 : index
    %28 = vector.load %arg9[%c0_21, %c0_22] : memref<1x10xf32, #tpu.memory_space<vmem>>, vector<1x10xf32>
    %29 = vector.broadcast %28 : vector<1x10xf32> to vector<256x10xf32>
    %30 = arith.addf %27, %29 : vector<256x10xf32>
    %cst_23 = arith.constant dense<0xFF800000> : vector<256xf32>
    %31 = vector.multi_reduction <maximumf>, %30, %cst_23 [1] : vector<256x10xf32> to vector<256xf32>
    %32 = vector.shape_cast %31 : vector<256xf32> to vector<256x1xf32>
    %33 = vector.broadcast %32 : vector<256x1xf32> to vector<256x10xf32>
    %34 = arith.subf %30, %33 : vector<256x10xf32>
    %35 = math.exp %34 : vector<256x10xf32>
    %cst_24 = arith.constant dense<0.000000e+00> : vector<256xf32>
    %36 = vector.multi_reduction <add>, %35, %cst_24 [1] : vector<256x10xf32> to vector<256xf32>
    %37 = vector.shape_cast %36 : vector<256xf32> to vector<256x1xf32>
    %38 = math.log %37 : vector<256x1xf32>
    %39 = vector.broadcast %38 : vector<256x1xf32> to vector<256x10xf32>
    %40 = arith.subf %34, %39 : vector<256x10xf32>
    %c0_25 = arith.constant 0 : index
    %c0_26 = arith.constant 0 : index
    %41 = vector.load %arg10[%c0_25, %c0_26] : memref<256x10xf32, #tpu.memory_space<vmem>>, vector<256x10xf32>
    tpu.vector_store %arg10[%c0_25, %c0_26], %40 {strides = array<i32>} : memref<256x10xf32, #tpu.memory_space<vmem>>, vector<256x10xf32>,
    return
  }
  func.func @transform_0(%arg0: i32) -> (i32, i32) {
    %c0_i32 = arith.constant 0 : i32
    %c0_i32_0 = arith.constant 0 : i32
    return %arg0, %c0_i32 : i32, i32
  }
  func.func @transform_1(%arg0: i32) -> (i32, i32) {
    %c0_i32 = arith.constant 0 : i32
    %c0_i32_0 = arith.constant 0 : i32
    %c0_i32_1 = arith.constant 0 : i32
    return %c0_i32, %c0_i32_0 : i32, i32
  }
  func.func @transform_2(%arg0: i32) -> (i32, i32) {
    %c0_i32 = arith.constant 0 : i32
    %c0_i32_0 = arith.constant 0 : i32
    %c0_i32_1 = arith.constant 0 : i32
    return %c0_i32, %c0_i32_0 : i32, i32
  }
  func.func @transform_3(%arg0: i32) -> (i32, i32) {
    %c0_i32 = arith.constant 0 : i32
    %c0_i32_0 = arith.constant 0 : i32
    %c0_i32_1 = arith.constant 0 : i32
    return %c0_i32, %c0_i32_0 : i32, i32
  }
  func.func @transform_4(%arg0: i32) -> (i32, i32) {
    %c0_i32 = arith.constant 0 : i32
    %c0_i32_0 = arith.constant 0 : i32
    %c0_i32_1 = arith.constant 0 : i32
    return %c0_i32, %c0_i32_0 : i32, i32
  }
  func.func @transform_5(%arg0: i32) -> (i32, i32) {
    %c0_i32 = arith.constant 0 : i32
    %c0_i32_0 = arith.constant 0 : i32
    %c0_i32_1 = arith.constant 0 : i32
    return %c0_i32, %c0_i32_0 : i32, i32
  }
  func.func @transform_6(%arg0: i32) -> (i32, i32) {
    %c0_i32 = arith.constant 0 : i32
    %c0_i32_0 = arith.constant 0 : i32
    %c0_i32_1 = arith.constant 0 : i32
    return %c0_i32, %c0_i32_0 : i32, i32
  }
  func.func @transform_7(%arg0: i32) -> (i32, i32) {
    %c0_i32 = arith.constant 0 : i32
    %c0_i32_0 = arith.constant 0 : i32
    %c0_i32_1 = arith.constant 0 : i32
    return %c0_i32, %c0_i32_0 : i32, i32
  }
  func.func @transform_8(%arg0: i32) -> (i32, i32) {
    %c0_i32 = arith.constant 0 : i32
    %c0_i32_0 = arith.constant 0 : i32
    %c0_i32_1 = arith.constant 0 : i32
    return %c0_i32, %c0_i32_0 : i32, i32
  }
  func.func @transform_9(%arg0: i32) -> (i32, i32) {
    %c0_i32 = arith.constant 0 : i32
    %c0_i32_0 = arith.constant 0 : i32
    return %arg0, %c0_i32 : i32, i32
  }
}

</mosaic_0001>

<llo_original>
// kernel: tpu_custom_call.1
$region0: #{tpu_custom_call.1}
  #allocation0 [shape = 'u32[]', space=smem, size = 0x4, offset = 0x4, fixed_abs, tag = 'smem constant byte address 0x4 - core index']
  #allocation1 [shape = 'u32[72,128]{1,0:T(1,128)}', space=vmem, size = 0x9000, scoped, tag = 'internal scratch']
  %s0 = inlined_call_operand.vmem [shape: f32[512,784], index: 0, kind: input, shape index: {}]
  %s1 = inlined_call_operand.vmem [shape: bf16[784,128], index: 1, kind: input, shape index: {}]
  %s2 = inlined_call_operand.vmem [shape: f32[1,128], index: 2, kind: input, shape index: {}]
  %s3 = inlined_call_operand.vmem [shape: bf16[128,128], index: 3, kind: input, shape index: {}]
  %s4 = inlined_call_operand.vmem [shape: f32[1,128], index: 4, kind: input, shape index: {}]
  %s5 = inlined_call_operand.vmem [shape: bf16[128,128], index: 5, kind: input, shape index: {}]
  %s6 = inlined_call_operand.vmem [shape: f32[1,128], index: 6, kind: input, shape index: {}]
  %s7 = inlined_call_operand.vmem [shape: bf16[128,10], index: 7, kind: input, shape index: {}]
  %s8 = inlined_call_operand.vmem [shape: f32[1,10], index: 8, kind: input, shape index: {}]
  %s9 = inlined_call_operand.vmem [shape: f32[512,10], index: 9, kind: output, shape index: {}]
  %s10 = sld [smem:[#allocation0]]
  $region69: #{tpu_custom_call.1} parent=0
    _
  %s12 = ssub.s32 1, %s10
  %s13 = scalar_select 0, %s12, %s10
  loop: start=0, step=1, limit=4
  $region2: #{tpu_custom_call.1} parent=0 // loop_pre_header
    _
  $region3: #{tpu_custom_call.1} parent=0 // loop_header
    %s15 = sphi 0, %s19
    %p16 = scmp.ge.s32.totalorder %s15, 4
    %s25 = sphi 0, %s27
    %s28 = sphi 0, %s25
    %s29 = sphi 0, %s28
    %s45 = sphi 0, %s29
    %s49 = sphi 0, %s49
    %s51 = sphi 0, %s49
    %s52 = sphi 0, %s51
    %s66 = sphi 0, %s52
    %s70 = sphi 0, %s70
    %s72 = sphi 0, %s70
    %s73 = sphi 0, %s72
    %s87 = sphi 0, %s73
    %s91 = sphi 0, %s91
    %s93 = sphi 0, %s91
    %s94 = sphi 0, %s93
    %s108 = sphi 0, %s94
    %s112 = sphi 0, %s112
    %s114 = sphi 0, %s112
    %s115 = sphi 0, %s114
    %s129 = sphi 0, %s115
    %s133 = sphi 0, %s133
    %s135 = sphi 0, %s133
    %s136 = sphi 0, %s135
    %s150 = sphi 0, %s136
    %s154 = sphi 0, %s154
    %s156 = sphi 0, %s154
    %s157 = sphi 0, %s156
    %s171 = sphi 0, %s157
    %s175 = sphi 0, %s175
    %s177 = sphi 0, %s175
    %s178 = sphi 0, %s177
    %s192 = sphi 0, %s178
    %s196 = sphi 0, %s196
    %s198 = sphi 0, %s196
    %s199 = sphi 0, %s198
    %s213 = sphi 0, %s199
    %s219 = sphi 0, %s221
    %s222 = sphi 0, %s219
    %s223 = sphi 0, %s222
    %s239 = sphi 0, %s223
  $region4: #{tpu_custom_call.1} parent=0 // loop_header_branch
    %18 = sbr.rel (%p16) target = $region8
  $region5: #{tpu_custom_call.1} parent=0 // loop_body
    %s20 = ssub.s32 %s15, 1
    %s21 = ssub.s32 %s15, 2
    %s22 = sadd.s32 %s15, 1
    %s23 = ssub.s32 %s15, %s22
    %p24 = scmp.eq.s32.totalorder %s23, 0
    %s26 = sadd.s32 %s25, 1
    %s27 = scalar_select %p24, %s25, %s26
    %p30 = pneg %p24
    %p31 = scmp.eq.s32.totalorder %s15, 1
    %p32 = por %p30, %p31
    %p33 = scmp.ne.s32.totalorder %s25, %s28
    %p34 = scmp.eq.s32.totalorder %s15, 0
    %p35 = por %p33, %p34
    %p36 = scmp.ne.s32.totalorder %s25, %s28
    %p37 = scmp.eq.s32.totalorder %s20, 1
    %p38 = por %p36, %p37
    %p39 = scmp.ne.s32.totalorder %s28, %s29
    %p40 = scmp.eq.s32.totalorder %s20, 0
    %p41 = por %p39, %p40
    %p42 = scmp.ne.s32.totalorder %s28, %s29
    %p43 = scmp.eq.s32.totalorder %s21, 1
    %p44 = por %p42, %p43
    %p46 = scmp.ne.s32.totalorder %s29, %s45
    %p47 = scmp.eq.s32.totalorder %s21, 0
    %p48 = por %p46, %p47
    %s50 = sadd.s32 %s49, 1
    %p53 = scmp.eq.s32.totalorder %s15, 1
    %p54 = scmp.ne.s32.totalorder %s49, %s51
    %p55 = scmp.eq.s32.totalorder %s15, 0
    %p56 = por %p54, %p55
    %p57 = scmp.ne.s32.totalorder %s49, %s51
    %p58 = scmp.eq.s32.totalorder %s20, 1
    %p59 = por %p57, %p58
    %p60 = scmp.ne.s32.totalorder %s51, %s52
    %p61 = scmp.eq.s32.totalorder %s20, 0
    %p62 = por %p60, %p61
    %p63 = scmp.ne.s32.totalorder %s51, %s52
    %p64 = scmp.eq.s32.totalorder %s21, 1
    %p65 = por %p63, %p64
    %p67 = scmp.ne.s32.totalorder %s52, %s66
    %p68 = scmp.eq.s32.totalorder %s21, 0
    %p69 = por %p67, %p68
    %s71 = sadd.s32 %s70, 1
    %p74 = scmp.eq.s32.totalorder %s15, 1
    %p75 = scmp.ne.s32.totalorder %s70, %s72
    %p76 = scmp.eq.s32.totalorder %s15, 0
    %p77 = por %p75, %p76
    %p78 = scmp.ne.s32.totalorder %s70, %s72
    %p79 = scmp.eq.s32.totalorder %s20, 1
    %p80 = por %p78, %p79
    %p81 = scmp.ne.s32.totalorder %s72, %s73
    %p82 = scmp.eq.s32.totalorder %s20, 0
    %p83 = por %p81, %p82
    %p84 = scmp.ne.s32.totalorder %s72, %s73
    %p85 = scmp.eq.s32.totalorder %s21, 1
    %p86 = por %p84, %p85
    %p88 = scmp.ne.s32.totalorder %s73, %s87
    %p89 = scmp.eq.s32.totalorder %s21, 0
    %p90 = por %p88, %p89
    %s92 = sadd.s32 %s91, 1
    %p95 = scmp.eq.s32.totalorder %s15, 1
    %p96 = scmp.ne.s32.totalorder %s91, %s93
    %p97 = scmp.eq.s32.totalorder %s15, 0
    %p98 = por %p96, %p97
    %p99 = scmp.ne.s32.totalorder %s91, %s93
    %p100 = scmp.eq.s32.totalorder %s20, 1
    %p101 = por %p99, %p100
    %p102 = scmp.ne.s32.totalorder %s93, %s94
    %p103 = scmp.eq.s32.totalorder %s20, 0
    %p104 = por %p102, %p103
    %p105 = scmp.ne.s32.totalorder %s93, %s94
    %p106 = scmp.eq.s32.totalorder %s21, 1
    %p107 = por %p105, %p106
    %p109 = scmp.ne.s32.totalorder %s94, %s108
    %p110 = scmp.eq.s32.totalorder %s21, 0
    %p111 = por %p109, %p110
    %s113 = sadd.s32 %s112, 1
    %p116 = scmp.eq.s32.totalorder %s15, 1
    %p117 = scmp.ne.s32.totalorder %s112, %s114
    %p118 = scmp.eq.s32.totalorder %s15, 0
    %p119 = por %p117, %p118
    %p120 = scmp.ne.s32.totalorder %s112, %s114
    %p121 = scmp.eq.s32.totalorder %s20, 1
    %p122 = por %p120, %p121
    %p123 = scmp.ne.s32.totalorder %s114, %s115
    %p124 = scmp.eq.s32.totalorder %s20, 0
    %p125 = por %p123, %p124
    %p126 = scmp.ne.s32.totalorder %s114, %s115
    %p127 = scmp.eq.s32.totalorder %s21, 1
    %p128 = por %p126, %p127
    %p130 = scmp.ne.s32.totalorder %s115, %s129
    %p131 = scmp.eq.s32.totalorder %s21, 0
    %p132 = por %p130, %p131
    %s134 = sadd.s32 %s133, 1
    %p137 = scmp.eq.s32.totalorder %s15, 1
    %p138 = scmp.ne.s32.totalorder %s133, %s135
    %p139 = scmp.eq.s32.totalorder %s15, 0
    %p140 = por %p138, %p139
    %p141 = scmp.ne.s32.totalorder %s133, %s135
    %p142 = scmp.eq.s32.totalorder %s20, 1
    %p143 = por %p141, %p142
    %p144 = scmp.ne.s32.totalorder %s135, %s136
    %p145 = scmp.eq.s32.totalorder %s20, 0
    %p146 = por %p144, %p145
    %p147 = scmp.ne.s32.totalorder %s135, %s136
    %p148 = scmp.eq.s32.totalorder %s21, 1
    %p149 = por %p147, %p148
    %p151 = scmp.ne.s32.totalorder %s136, %s150
    %p152 = scmp.eq.s32.totalorder %s21, 0
    %p153 = por %p151, %p152
    %s155 = sadd.s32 %s154, 1
    %p158 = scmp.eq.s32.totalorder %s15, 1
    %p159 = scmp.ne.s32.totalorder %s154, %s156
    %p160 = scmp.eq.s32.totalorder %s15, 0
    %p161 = por %p159, %p160
    %p162 = scmp.ne.s32.totalorder %s154, %s156
    %p163 = scmp.eq.s32.totalorder %s20, 1
    %p164 = por %p162, %p163
    %p165 = scmp.ne.s32.totalorder %s156, %s157
    %p166 = scmp.eq.s32.totalorder %s20, 0
    %p167 = por %p165, %p166
    %p168 = scmp.ne.s32.totalorder %s156, %s157
    %p169 = scmp.eq.s32.totalorder %s21, 1
    %p170 = por %p168, %p169
    %p172 = scmp.ne.s32.totalorder %s157, %s171
    %p173 = scmp.eq.s32.totalorder %s21, 0
    %p174 = por %p172, %p173
    %s176 = sadd.s32 %s175, 1
    %p179 = scmp.eq.s32.totalorder %s15, 1
    %p180 = scmp.ne.s32.totalorder %s175, %s177
    %p181 = scmp.eq.s32.totalorder %s15, 0
    %p182 = por %p180, %p181
    %p183 = scmp.ne.s32.totalorder %s175, %s177
    %p184 = scmp.eq.s32.totalorder %s20, 1
    %p185 = por %p183, %p184
    %p186 = scmp.ne.s32.totalorder %s177, %s178
    %p187 = scmp.eq.s32.totalorder %s20, 0
    %p188 = por %p186, %p187
    %p189 = scmp.ne.s32.totalorder %s177, %s178
    %p190 = scmp.eq.s32.totalorder %s21, 1
    %p191 = por %p189, %p190
    %p193 = scmp.ne.s32.totalorder %s178, %s192
    %p194 = scmp.eq.s32.totalorder %s21, 0
    %p195 = por %p193, %p194
    %s197 = sadd.s32 %s196, 1
    %p200 = scmp.eq.s32.totalorder %s15, 1
    %p201 = scmp.ne.s32.totalorder %s196, %s198
    %p202 = scmp.eq.s32.totalorder %s15, 0
    %p203 = por %p201, %p202
    %p204 = scmp.ne.s32.totalorder %s196, %s198
    %p205 = scmp.eq.s32.totalorder %s20, 1
    %p206 = por %p204, %p205
    %p207 = scmp.ne.s32.totalorder %s198, %s199
    %p208 = scmp.eq.s32.totalorder %s20, 0
    %p209 = por %p207, %p208
    %p210 = scmp.ne.s32.totalorder %s198, %s199
    %p211 = scmp.eq.s32.totalorder %s21, 1
    %p212 = por %p210, %p211
    %p214 = scmp.ne.s32.totalorder %s199, %s213
    %p215 = scmp.eq.s32.totalorder %s21, 0
    %p216 = por %p214, %p215
    %s217 = ssub.s32 %s15, %s22
    %p218 = scmp.eq.s32.totalorder %s217, 0
    %s220 = sadd.s32 %s219, 1
    %s221 = scalar_select %p218, %s219, %s220
    %p224 = pneg %p218
    %p225 = scmp.eq.s32.totalorder %s15, 1
    %p226 = por %p224, %p225
    %p227 = scmp.ne.s32.totalorder %s219, %s222
    %p228 = scmp.eq.s32.totalorder %s15, 0
    %p229 = por %p227, %p228
    %p230 = scmp.ne.s32.totalorder %s219, %s222
    %p231 = scmp.eq.s32.totalorder %s20, 1
    %p232 = por %p230, %p231
    %p233 = scmp.ne.s32.totalorder %s222, %s223
    %p234 = scmp.eq.s32.totalorder %s20, 0
    %p235 = por %p233, %p234
    %p236 = scmp.ne.s32.totalorder %s222, %s223
    %p237 = scmp.eq.s32.totalorder %s21, 1
    %p238 = por %p236, %p237
    %p240 = scmp.ne.s32.totalorder %s223, %s239
    %p241 = scmp.eq.s32.totalorder %s21, 0
    %p242 = por %p240, %p241
    %p243 = scmp.le.s32.totalorder 1, %s15
    %p244 = scmp.lt.s32.totalorder %s15, 3
    %p245 = pnand %p243, %p244
    %p246 = pneg %p245
    // Predicated region
    $region9: #{tpu_custom_call.1} parent=5 // pred_check
      _
    $region10: #{tpu_custom_call.1} parent=5 // pred_check_branch
      %248 = sbr.rel (%p245) target = $region12
    $region11: #{tpu_custom_call.1} parent=5 // pred_region
      %s249 = ssub.s32 %s15, 1
      // Predicated region
      $region13: #{tpu_custom_call.1} parent=11 // pred_check
        %p250 = pneg %p62
      $region14: #{tpu_custom_call.1} parent=11 // pred_check_branch
        %252 = sbr.rel (%p250) target = $region16
      $region15: #{tpu_custom_call.1} parent=11 // pred_region
        _
      $region16: #{tpu_custom_call.1} parent=11 // pred_fallthru
        _
      // Predicated region
      $region17: #{tpu_custom_call.1} parent=11 // pred_check
        %p253 = pneg %p83
      $region18: #{tpu_custom_call.1} parent=11 // pred_check_branch
        %255 = sbr.rel (%p253) target = $region20
      $region19: #{tpu_custom_call.1} parent=11 // pred_region
        _
      $region20: #{tpu_custom_call.1} parent=11 // pred_fallthru
        _
      // Predicated region
      $region21: #{tpu_custom_call.1} parent=11 // pred_check
        %p256 = pneg %p104
      $region22: #{tpu_custom_call.1} parent=11 // pred_check_branch
        %258 = sbr.rel (%p256) target = $region24
      $region23: #{tpu_custom_call.1} parent=11 // pred_region
        _
      $region24: #{tpu_custom_call.1} parent=11 // pred_fallthru
        _
      // Predicated region
      $region25: #{tpu_custom_call.1} parent=11 // pred_check
        %p259 = pneg %p125
      $region26: #{tpu_custom_call.1} parent=11 // pred_check_branch
        %261 = sbr.rel (%p259) target = $region28
      $region27: #{tpu_custom_call.1} parent=11 // pred_region
        _
      $region28: #{tpu_custom_call.1} parent=11 // pred_fallthru
        _
      // Predicated region
      $region29: #{tpu_custom_call.1} parent=11 // pred_check
        %p262 = pneg %p146
      $region30: #{tpu_custom_call.1} parent=11 // pred_check_branch
        %264 = sbr.rel (%p262) target = $region32
      $region31: #{tpu_custom_call.1} parent=11 // pred_region
        _
      $region32: #{tpu_custom_call.1} parent=11 // pred_fallthru
        _
      // Predicated region
      $region33: #{tpu_custom_call.1} parent=11 // pred_check
        %p265 = pneg %p167
      $region34: #{tpu_custom_call.1} parent=11 // pred_check_branch
        %267 = sbr.rel (%p265) target = $region36
      $region35: #{tpu_custom_call.1} parent=11 // pred_region
        _
      $region36: #{tpu_custom_call.1} parent=11 // pred_fallthru
        _
      // Predicated region
      $region37: #{tpu_custom_call.1} parent=11 // pred_check
        %p268 = pneg %p188
      $region38: #{tpu_custom_call.1} parent=11 // pred_check_branch
        %270 = sbr.rel (%p268) target = $region40
      $region39: #{tpu_custom_call.1} parent=11 // pred_region
        _
      $region40: #{tpu_custom_call.1} parent=11 // pred_fallthru
        _
      // Predicated region
      $region41: #{tpu_custom_call.1} parent=11 // pred_check
        %p271 = pneg %p209
      $region42: #{tpu_custom_call.1} parent=11 // pred_check_branch
        %273 = sbr.rel (%p271) target = $region44
      $region43: #{tpu_custom_call.1} parent=11 // pred_region
        _
      $region44: #{tpu_custom_call.1} parent=11 // pred_fallthru
        _
    $region12: #{tpu_custom_call.1} parent=5 // pred_fallthru
      _
    %p274 = scmp.lt.s32.totalorder %s15, 2
    // Predicated region
    $region45: #{tpu_custom_call.1} parent=5 // pred_check
      %p275 = pneg %p274
    $region46: #{tpu_custom_call.1} parent=5 // pred_check_branch
      %277 = sbr.rel (%p275) target = $region48
    $region47: #{tpu_custom_call.1} parent=5 // pred_region
      // Predicated region
      $region49: #{tpu_custom_call.1} parent=47 // pred_check
        %p278 = pneg %p35
      $region50: #{tpu_custom_call.1} parent=47 // pred_check_branch
        %280 = sbr.rel (%p278) target = $region52
      $region51: #{tpu_custom_call.1} parent=47 // pred_region
        %s281 = smul.u32 32, %s15
        %p282 = scmp.lt.s32.totalorder %s281, 63
        %s283 = scalar_select %p282, %s281, 63
        %s284 = smul.addr %s283, 7
        %s285 = smul.addr %s284, 8
        %s286 = scalar_lea.vmem %s0, %s285
        %s287 = smul.u32 32, %s15
      $region52: #{tpu_custom_call.1} parent=47 // pred_fallthru
        _
    $region48: #{tpu_custom_call.1} parent=5 // pred_fallthru
      _
    %p288 = scmp.le.s32.totalorder 1, %s15
    %p289 = scmp.lt.s32.totalorder %s15, 3
    %p290 = pnand %p288, %p289
    %p291 = pneg %p290
    // Predicated region
    $region53: #{tpu_custom_call.1} parent=5 // pred_check
      _
    $region54: #{tpu_custom_call.1} parent=5 // pred_check_branch
      %293 = sbr.rel (%p290) target = $region56
    $region55: #{tpu_custom_call.1} parent=5 // pred_region
      %s294 = ssub.s32 %s15, 1
      %s295 = smul.u32 32, %s20
      %p296 = scmp.lt.s32.totalorder %s295, 63
      %s297 = scalar_select %p296, %s295, 63
      %s298 = smul.addr %s297, 7
      %s299 = smul.addr %s298, 8
      %s300 = scalar_lea.vmem %s0, %s299
      %p301 = pneg %p41
      %p302 = pneg %p38
      %p303 = pneg %p62
      %p304 = pneg %p59
      %p305 = pneg %p83
      %p306 = pneg %p80
      %p307 = pneg %p104
      %p308 = pneg %p101
      %p309 = pneg %p125
      %p310 = pneg %p122
      %p311 = pneg %p146
      %p312 = pneg %p143
      %p313 = pneg %p167
      %p314 = pneg %p164
      %p315 = pneg %p188
      %p316 = pneg %p185
      %p317 = pneg %p209
      %p318 = pneg %p206
      %p319 = pneg %p235
      %p320 = pneg %p232
      %s321 = smul.u32 32, %s20
      %p322 = scmp.lt.s32.totalorder %s321, 63
      %s323 = scalar_select %p322, %s321, 63
      %s324 = smul.addr %s323, 8
      %s325 = scalar_lea.vmem %s9, %s324
      %s326 = smul.u32 32, %s20
      %p327 = scmp.lt.s32.totalorder %s326, 63
      %s328 = scalar_select %p327, %s326, 63
      %s329 = smul.addr %s328, 7
      %s330 = smul.addr %s329, 8
      %s331 = scalar_lea.vmem %s0, %s330
      %s332 = smul.u32 32, %s20
      %s333 = smul.u32 32, %s20
      %p334 = scmp.lt.s32.totalorder %s333, 63
      %s335 = scalar_select %p334, %s333, 63
      %s336 = smul.addr %s335, 8
      %s337 = scalar_lea.vmem %s9, %s336
      %s338 = smul.u32 32, %s20
      %v340 = vld [vmem:[%s331] sm:$0xff]
      %v341 = vld [vmem:[%s331 + $0x8] sm:$0xff]
      %v342 = vld [vmem:[%s331 + $0x10] sm:$0xff]
      %v343 = vld [vmem:[%s331 + $0x18] sm:$0xff]
      %v344 = vld [vmem:[%s331 + $0x20] sm:$0xff]
      %v345 = vld [vmem:[%s331 + $0x28] sm:$0xff]
      %v346 = vld [vmem:[%s331 + $0x30] sm:$0xff]
      %v347 = vld [vmem:[%s331 + $0x38] sm:$0xff]
      %v348 = vld [vmem:[%s331 + $0x40] sm:$0xff]
      %v349 = vld [vmem:[%s331 + $0x48] sm:$0xff]
      %v350 = vld [vmem:[%s331 + $0x50] sm:$0xff]
      %v351 = vld [vmem:[%s331 + $0x58] sm:$0xff]
      %v352 = vld [vmem:[%s331 + $0x60] sm:$0xff]
      %v353 = vld [vmem:[%s331 + $0x68] sm:$0xff]
      %v354 = vld [vmem:[%s331 + $0x70] sm:$0xff]
      %v355 = vld [vmem:[%s331 + $0x78] sm:$0xff]
      %v356 = vld [vmem:[%s331 + $0x80] sm:$0xff]
      %v357 = vld [vmem:[%s331 + $0x88] sm:$0xff]
      %v358 = vld [vmem:[%s331 + $0x90] sm:$0xff]
      %v359 = vld [vmem:[%s331 + $0x98] sm:$0xff]
      %v360 = vld [vmem:[%s331 + $0xa0] sm:$0xff]
      %v361 = vld [vmem:[%s331 + $0xa8] sm:$0xff]
      %v362 = vld [vmem:[%s331 + $0xb0] sm:$0xff]
      %v363 = vld [vmem:[%s331 + $0xb8] sm:$0xff]
      %v364 = vld [vmem:[%s331 + $0xc0] sm:$0xff]
      %v365 = vld [vmem:[%s331 + $0xc8] sm:$0xff]
      %v366 = vld [vmem:[%s331 + $0xd0] sm:$0xff]
      %v367 = vld [vmem:[%s331 + $0xd8] sm:$0xff]
      %v368 = vld [vmem:[%s331 + $0xe0] sm:$0xff]
      %v369 = vld [vmem:[%s331 + $0xe8] sm:$0xff]
      %v370 = vld [vmem:[%s331 + $0xf0] sm:$0xff]
      %v371 = vld [vmem:[%s331 + $0xf8] sm:$0xff]
      %v372 = vld [vmem:[%s331 + $0x100] sm:$0xff]
      %v373 = vld [vmem:[%s331 + $0x108] sm:$0xff]
      %v374 = vld [vmem:[%s331 + $0x110] sm:$0xff]
      %v375 = vld [vmem:[%s331 + $0x118] sm:$0xff]
      %v376 = vld [vmem:[%s331 + $0x120] sm:$0xff]
      %v377 = vld [vmem:[%s331 + $0x128] sm:$0xff]
      %v378 = vld [vmem:[%s331 + $0x130] sm:$0xff]
      %v379 = vld [vmem:[%s331 + $0x138] sm:$0xff]
      %v380 = vld [vmem:[%s331 + $0x140] sm:$0xff]
      %v381 = vld [vmem:[%s331 + $0x148] sm:$0xff]
      %v382 = vld [vmem:[%s331 + $0x150] sm:$0xff]
      %v383 = vld [vmem:[%s331 + $0x158] sm:$0xff]
      %v384 = vld [vmem:[%s331 + $0x160] sm:$0xff]
      %v385 = vld [vmem:[%s331 + $0x168] sm:$0xff]
      %v386 = vld [vmem:[%s331 + $0x170] sm:$0xff]
      %v387 = vld [vmem:[%s331 + $0x178] sm:$0xff]
      %v388 = vld [vmem:[%s331 + $0x180] sm:$0xff]
      %v389 = vld [vmem:[%s331 + $0x188] sm:$0xff]
      %v390 = vld [vmem:[%s331 + $0x190] sm:$0xff]
      %v391 = vld [vmem:[%s331 + $0x198] sm:$0xff]
      %v392 = vld [vmem:[%s331 + $0x1a0] sm:$0xff]
      %v393 = vld [vmem:[%s331 + $0x1a8] sm:$0xff]
      %v394 = vld [vmem:[%s331 + $0x1b0] sm:$0xff]
      %v395 = vld [vmem:[%s331 + $0x1b8] sm:$0xff]
      %v396 = vld [vmem:[%s331 + $0x1c0] sm:$0xff]
      %v397 = vld [vmem:[%s331 + $0x1c8] sm:$0xff]
      %v398 = vld [vmem:[%s331 + $0x1d0] sm:$0xff]
      %v399 = vld [vmem:[%s331 + $0x1d8] sm:$0xff]
      %v400 = vld [vmem:[%s331 + $0x1e0] sm:$0xff]
      %v401 = vld [vmem:[%s331 + $0x1e8] sm:$0xff]
      %v402 = vld [vmem:[%s331 + $0x1f0] sm:$0xff]
      %v403 = vld [vmem:[%s331 + $0x1f8] sm:$0xff]
      %v404 = vld [vmem:[%s331 + $0x200] sm:$0xff]
      %v405 = vld [vmem:[%s331 + $0x208] sm:$0xff]
      %v406 = vld [vmem:[%s331 + $0x210] sm:$0xff]
      %v407 = vld [vmem:[%s331 + $0x218] sm:$0xff]
      %v408 = vld [vmem:[%s331 + $0x220] sm:$0xff]
      %v409 = vld [vmem:[%s331 + $0x228] sm:$0xff]
      %v410 = vld [vmem:[%s331 + $0x230] sm:$0xff]
      %v411 = vld [vmem:[%s331 + $0x238] sm:$0xff]
      %v412 = vld [vmem:[%s331 + $0x240] sm:$0xff]
      %v413 = vld [vmem:[%s331 + $0x248] sm:$0xff]
      %v414 = vld [vmem:[%s331 + $0x250] sm:$0xff]
      %v415 = vld [vmem:[%s331 + $0x258] sm:$0xff]
      %v416 = vld [vmem:[%s331 + $0x260] sm:$0xff]
      %v417 = vld [vmem:[%s331 + $0x268] sm:$0xff]
      %v418 = vld [vmem:[%s331 + $0x270] sm:$0xff]
      %v419 = vld [vmem:[%s331 + $0x278] sm:$0xff]
      %v420 = vld [vmem:[%s331 + $0x280] sm:$0xff]
      %v421 = vld [vmem:[%s331 + $0x288] sm:$0xff]
      %v422 = vld [vmem:[%s331 + $0x290] sm:$0xff]
      %v423 = vld [vmem:[%s331 + $0x298] sm:$0xff]
      %v424 = vld [vmem:[%s331 + $0x2a0] sm:$0xff]
      %v425 = vld [vmem:[%s331 + $0x2a8] sm:$0xff]
      %v426 = vld [vmem:[%s331 + $0x2b0] sm:$0xff]
      %v427 = vld [vmem:[%s331 + $0x2b8] sm:$0xff]
      %v428 = vld [vmem:[%s331 + $0x2c0] sm:$0xff]
      %v429 = vld [vmem:[%s331 + $0x2c8] sm:$0xff]
      %v430 = vld [vmem:[%s331 + $0x2d0] sm:$0xff]
      %v431 = vld [vmem:[%s331 + $0x2d8] sm:$0xff]
      %v432 = vld [vmem:[%s331 + $0x2e0] sm:$0xff]
      %v433 = vld [vmem:[%s331 + $0x2e8] sm:$0xff]
      %v434 = vld [vmem:[%s331 + $0x2f0] sm:$0xff]
      %v435 = vld [vmem:[%s331 + $0x2f8] sm:$0xff]
      %v436 = vld [vmem:[%s331 + $0x300] sm:$0xff]
      %v437 = vld [vmem:[%s331 + $0x308] sm:$0xff]
      %v438 = vld [vmem:[%s331 + $0x310] sm:$0xff]
      %v439 = vld [vmem:[%s331 + $0x318] sm:$0xff]
      %v440 = vld [vmem:[%s331 + $0x320] sm:$0xff]
      %v441 = vld [vmem:[%s331 + $0x328] sm:$0xff]
      %v442 = vld [vmem:[%s331 + $0x330] sm:$0xff]
      %v443 = vld [vmem:[%s331 + $0x338] sm:$0xff]
      %v444 = vld [vmem:[%s331 + $0x340] sm:$0xff]
      %v445 = vld [vmem:[%s331 + $0x348] sm:$0xff]
      %v446 = vld [vmem:[%s331 + $0x350] sm:$0xff]
      %v447 = vld [vmem:[%s331 + $0x358] sm:$0xff]
      %v448 = vld [vmem:[%s331 + $0x360] sm:$0xff]
      %v449 = vld [vmem:[%s331 + $0x368] sm:$0xff]
      %v450 = vld [vmem:[%s331 + $0x370] sm:$0xff]
      %v451 = vld [vmem:[%s331 + $0x378] sm:$0xff]
      %v452 = vld [vmem:[%s331 + $0x380] sm:$0xff]
      %v453 = vld [vmem:[%s331 + $0x388] sm:$0xff]
      %v454 = vld [vmem:[%s331 + $0x390] sm:$0xff]
      %v455 = vld [vmem:[%s331 + $0x398] sm:$0xff]
      %v456 = vld [vmem:[%s331 + $0x3a0] sm:$0xff]
      %v457 = vld [vmem:[%s331 + $0x3a8] sm:$0xff]
      %v458 = vld [vmem:[%s331 + $0x3b0] sm:$0xff]
      %v459 = vld [vmem:[%s331 + $0x3b8] sm:$0xff]
      %v460 = vld [vmem:[%s331 + $0x3c0] sm:$0xff]
      %v461 = vld [vmem:[%s331 + $0x3c8] sm:$0xff]
      %v462 = vld [vmem:[%s331 + $0x3d0] sm:$0xff]
      %v463 = vld [vmem:[%s331 + $0x3d8] sm:$0xff]
      %v464 = vld [vmem:[%s331 + $0x3e0] sm:$0xff]
      %v465 = vld [vmem:[%s331 + $0x3e8] sm:$0xff]
      %v466 = vld [vmem:[%s331 + $0x3f0] sm:$0xff]
      %v467 = vld [vmem:[%s331 + $0x3f8] sm:$0xff]
      %v468 = vld [vmem:[%s331 + $0x400] sm:$0xff]
      %v469 = vld [vmem:[%s331 + $0x408] sm:$0xff]
      %v470 = vld [vmem:[%s331 + $0x410] sm:$0xff]
      %v471 = vld [vmem:[%s331 + $0x418] sm:$0xff]
      %v472 = vld [vmem:[%s331 + $0x420] sm:$0xff]
      %v473 = vld [vmem:[%s331 + $0x428] sm:$0xff]
      %v474 = vld [vmem:[%s331 + $0x430] sm:$0xff]
      %v475 = vld [vmem:[%s331 + $0x438] sm:$0xff]
      %v476 = vld [vmem:[%s331 + $0x440] sm:$0xff]
      %v477 = vld [vmem:[%s331 + $0x448] sm:$0xff]
      %v478 = vld [vmem:[%s331 + $0x450] sm:$0xff]
      %v479 = vld [vmem:[%s331 + $0x458] sm:$0xff]
      %v480 = vld [vmem:[%s331 + $0x460] sm:$0xff]
      %v481 = vld [vmem:[%s331 + $0x468] sm:$0xff]
      %v482 = vld [vmem:[%s331 + $0x470] sm:$0xff]
      %v483 = vld [vmem:[%s331 + $0x478] sm:$0xff]
      %v484 = vld [vmem:[%s331 + $0x480] sm:$0xff]
      %v485 = vld [vmem:[%s331 + $0x488] sm:$0xff]
      %v486 = vld [vmem:[%s331 + $0x490] sm:$0xff]
      %v487 = vld [vmem:[%s331 + $0x498] sm:$0xff]
      %v488 = vld [vmem:[%s331 + $0x4a0] sm:$0xff]
      %v489 = vld [vmem:[%s331 + $0x4a8] sm:$0xff]
      %v490 = vld [vmem:[%s331 + $0x4b0] sm:$0xff]
      %v491 = vld [vmem:[%s331 + $0x4b8] sm:$0xff]
      %v492 = vld [vmem:[%s331 + $0x4c0] sm:$0xff]
      %v493 = vld [vmem:[%s331 + $0x4c8] sm:$0xff]
      %v494 = vld [vmem:[%s331 + $0x4d0] sm:$0xff]
      %v495 = vld [vmem:[%s331 + $0x4d8] sm:$0xff]
      %v496 = vld [vmem:[%s331 + $0x4e0] sm:$0xff]
      %v497 = vld [vmem:[%s331 + $0x4e8] sm:$0xff]
      %v498 = vld [vmem:[%s331 + $0x4f0] sm:$0xff]
      %v499 = vld [vmem:[%s331 + $0x4f8] sm:$0xff]
      %v500 = vld [vmem:[%s331 + $0x500] sm:$0xff]
      %v501 = vld [vmem:[%s331 + $0x508] sm:$0xff]
      %v502 = vld [vmem:[%s331 + $0x510] sm:$0xff]
      %v503 = vld [vmem:[%s331 + $0x518] sm:$0xff]
      %v504 = vld [vmem:[%s331 + $0x520] sm:$0xff]
      %v505 = vld [vmem:[%s331 + $0x528] sm:$0xff]
      %v506 = vld [vmem:[%s331 + $0x530] sm:$0xff]
      %v507 = vld [vmem:[%s331 + $0x538] sm:$0xff]
      %v508 = vld [vmem:[%s331 + $0x540] sm:$0xff]
      %v509 = vld [vmem:[%s331 + $0x548] sm:$0xff]
      %v510 = vld [vmem:[%s331 + $0x550] sm:$0xff]
      %v511 = vld [vmem:[%s331 + $0x558] sm:$0xff]
      %v512 = vld [vmem:[%s331 + $0x560] sm:$0xff]
      %v513 = vld [vmem:[%s331 + $0x568] sm:$0xff]
      %v514 = vld [vmem:[%s331 + $0x570] sm:$0xff]
      %v515 = vld [vmem:[%s331 + $0x578] sm:$0xff]
      %v516 = vld [vmem:[%s331 + $0x580] sm:$0xff]
      %v517 = vld [vmem:[%s331 + $0x588] sm:$0xff]
      %v518 = vld [vmem:[%s331 + $0x590] sm:$0xff]
      %v519 = vld [vmem:[%s331 + $0x598] sm:$0xff]
      %v520 = vld [vmem:[%s331 + $0x5a0] sm:$0xff]
      %v521 = vld [vmem:[%s331 + $0x5a8] sm:$0xff]
      %v522 = vld [vmem:[%s331 + $0x5b0] sm:$0xff]
      %v523 = vld [vmem:[%s331 + $0x5b8] sm:$0xff]
      %v524 = vld [vmem:[%s331 + $0x5c0] sm:$0xff]
      %v525 = vld [vmem:[%s331 + $0x5c8] sm:$0xff]
      %v526 = vld [vmem:[%s331 + $0x5d0] sm:$0xff]
      %v527 = vld [vmem:[%s331 + $0x5d8] sm:$0xff]
      %v528 = vld [vmem:[%s331 + $0x5e0] sm:$0xff]
      %v529 = vld [vmem:[%s331 + $0x5e8] sm:$0xff]
      %v530 = vld [vmem:[%s331 + $0x5f0] sm:$0xff]
      %v531 = vld [vmem:[%s331 + $0x5f8] sm:$0xff]
      %v532 = vld [vmem:[%s331 + $0x600] sm:$0xff]
      %v533 = vld [vmem:[%s331 + $0x608] sm:$0xff]
      %v534 = vld [vmem:[%s331 + $0x610] sm:$0xff]
      %v535 = vld [vmem:[%s331 + $0x618] sm:$0xff]
      %v536 = vld [vmem:[%s331 + $0x620] sm:$0xff]
      %v537 = vld [vmem:[%s331 + $0x628] sm:$0xff]
      %v538 = vld [vmem:[%s331 + $0x630] sm:$0xff]
      %v539 = vld [vmem:[%s331 + $0x638] sm:$0xff]
      %v540 = vld [vmem:[%s331 + $0x640] sm:$0xff]
      %v541 = vld [vmem:[%s331 + $0x648] sm:$0xff]
      %v542 = vld [vmem:[%s331 + $0x650] sm:$0xff]
      %v543 = vld [vmem:[%s331 + $0x658] sm:$0xff]
      %v544 = vld [vmem:[%s331 + $0x660] sm:$0xff]
      %v545 = vld [vmem:[%s331 + $0x668] sm:$0xff]
      %v546 = vld [vmem:[%s331 + $0x670] sm:$0xff]
      %v547 = vld [vmem:[%s331 + $0x678] sm:$0xff]
      %v548 = vld [vmem:[%s331 + $0x680] sm:$0xff]
      %v549 = vld [vmem:[%s331 + $0x688] sm:$0xff]
      %v550 = vld [vmem:[%s331 + $0x690] sm:$0xff]
      %v551 = vld [vmem:[%s331 + $0x698] sm:$0xff]
      %v552 = vld [vmem:[%s331 + $0x6a0] sm:$0xff]
      %v553 = vld [vmem:[%s331 + $0x6a8] sm:$0xff]
      %v554 = vld [vmem:[%s331 + $0x6b0] sm:$0xff]
      %v555 = vld [vmem:[%s331 + $0x6b8] sm:$0xff]
      %v556 = vld [vmem:[%s331 + $0x6c0] sm:$0xff]
      %v557 = vld [vmem:[%s331 + $0x6c8] sm:$0xff]
      %v558 = vld [vmem:[%s331 + $0x6d0] sm:$0xff]
      %v559 = vld [vmem:[%s331 + $0x6d8] sm:$0xff]
      %v560 = vld [vmem:[%s331 + $0x6e0] sm:$0xff]
      %v561 = vld [vmem:[%s331 + $0x6e8] sm:$0xff]
      %v562 = vld [vmem:[%s331 + $0x6f0] sm:$0xff]
      %v563 = vld [vmem:[%s331 + $0x6f8] sm:$0xff]
      %v564 = vpack.c.bf16 %v347, %v340
      %v565 = vpack.c.bf16 %v348, %v341
      %v566 = vpack.c.bf16 %v349, %v342
      %v567 = vpack.c.bf16 %v350, %v343
      %v568 = vpack.c.bf16 %v351, %v344
      %v569 = vpack.c.bf16 %v352, %v345
      %v570 = vpack.c.bf16 %v353, %v346
      %v571 = vpack.c.bf16 %v361, %v354
      %v572 = vpack.c.bf16 %v362, %v355
      %v573 = vpack.c.bf16 %v363, %v356
      %v574 = vpack.c.bf16 %v364, %v357
      %v575 = vpack.c.bf16 %v365, %v358
      %v576 = vpack.c.bf16 %v366, %v359
      %v577 = vpack.c.bf16 %v367, %v360
      %v578 = vpack.c.bf16 %v375, %v368
      %v579 = vpack.c.bf16 %v376, %v369
      %v580 = vpack.c.bf16 %v377, %v370
      %v581 = vpack.c.bf16 %v378, %v371
      %v582 = vpack.c.bf16 %v379, %v372
      %v583 = vpack.c.bf16 %v380, %v373
      %v584 = vpack.c.bf16 %v381, %v374
      %v585 = vpack.c.bf16 %v389, %v382
      %v586 = vpack.c.bf16 %v390, %v383
      %v587 = vpack.c.bf16 %v391, %v384
      %v588 = vpack.c.bf16 %v392, %v385
      %v589 = vpack.c.bf16 %v393, %v386
      %v590 = vpack.c.bf16 %v394, %v387
      %v591 = vpack.c.bf16 %v395, %v388
      %v592 = vpack.c.bf16 %v403, %v396
      %v593 = vpack.c.bf16 %v404, %v397
      %v594 = vpack.c.bf16 %v405, %v398
      %v595 = vpack.c.bf16 %v406, %v399
      %v596 = vpack.c.bf16 %v407, %v400
      %v597 = vpack.c.bf16 %v408, %v401
      %v598 = vpack.c.bf16 %v409, %v402
      %v599 = vpack.c.bf16 %v417, %v410
      %v600 = vpack.c.bf16 %v418, %v411
      %v601 = vpack.c.bf16 %v419, %v412
      %v602 = vpack.c.bf16 %v420, %v413
      %v603 = vpack.c.bf16 %v421, %v414
      %v604 = vpack.c.bf16 %v422, %v415
      %v605 = vpack.c.bf16 %v423, %v416
      %v606 = vpack.c.bf16 %v431, %v424
      %v607 = vpack.c.bf16 %v432, %v425
      %v608 = vpack.c.bf16 %v433, %v426
      %v609 = vpack.c.bf16 %v434, %v427
      %v610 = vpack.c.bf16 %v435, %v428
      %v611 = vpack.c.bf16 %v436, %v429
      %v612 = vpack.c.bf16 %v437, %v430
      %v613 = vpack.c.bf16 %v445, %v438
      %v614 = vpack.c.bf16 %v446, %v439
      %v615 = vpack.c.bf16 %v447, %v440
      %v616 = vpack.c.bf16 %v448, %v441
      %v617 = vpack.c.bf16 %v449, %v442
      %v618 = vpack.c.bf16 %v450, %v443
      %v619 = vpack.c.bf16 %v451, %v444
      %v620 = vpack.c.bf16 %v459, %v452
      %v621 = vpack.c.bf16 %v460, %v453
      %v622 = vpack.c.bf16 %v461, %v454
      %v623 = vpack.c.bf16 %v462, %v455
      %v624 = vpack.c.bf16 %v463, %v456
      %v625 = vpack.c.bf16 %v464, %v457
      %v626 = vpack.c.bf16 %v465, %v458
      %v627 = vpack.c.bf16 %v473, %v466
      %v628 = vpack.c.bf16 %v474, %v467
      %v629 = vpack.c.bf16 %v475, %v468
      %v630 = vpack.c.bf16 %v476, %v469
      %v631 = vpack.c.bf16 %v477, %v470
      %v632 = vpack.c.bf16 %v478, %v471
      %v633 = vpack.c.bf16 %v479, %v472
      %v634 = vpack.c.bf16 %v487, %v480
      %v635 = vpack.c.bf16 %v488, %v481
      %v636 = vpack.c.bf16 %v489, %v482
      %v637 = vpack.c.bf16 %v490, %v483
      %v638 = vpack.c.bf16 %v491, %v484
      %v639 = vpack.c.bf16 %v492, %v485
      %v640 = vpack.c.bf16 %v493, %v486
      %v641 = vpack.c.bf16 %v501, %v494
      %v642 = vpack.c.bf16 %v502, %v495
      %v643 = vpack.c.bf16 %v503, %v496
      %v644 = vpack.c.bf16 %v504, %v497
      %v645 = vpack.c.bf16 %v505, %v498
      %v646 = vpack.c.bf16 %v506, %v499
      %v647 = vpack.c.bf16 %v507, %v500
      %v648 = vpack.c.bf16 %v515, %v508
      %v649 = vpack.c.bf16 %v516, %v509
      %v650 = vpack.c.bf16 %v517, %v510
      %v651 = vpack.c.bf16 %v518, %v511
      %v652 = vpack.c.bf16 %v519, %v512
      %v653 = vpack.c.bf16 %v520, %v513
      %v654 = vpack.c.bf16 %v521, %v514
      %v655 = vpack.c.bf16 %v529, %v522
      %v656 = vpack.c.bf16 %v530, %v523
      %v657 = vpack.c.bf16 %v531, %v524
      %v658 = vpack.c.bf16 %v532, %v525
      %v659 = vpack.c.bf16 %v533, %v526
      %v660 = vpack.c.bf16 %v534, %v527
      %v661 = vpack.c.bf16 %v535, %v528
      %v662 = vpack.c.bf16 %v543, %v536
      %v663 = vpack.c.bf16 %v544, %v537
      %v664 = vpack.c.bf16 %v545, %v538
      %v665 = vpack.c.bf16 %v546, %v539
      %v666 = vpack.c.bf16 %v547, %v540
      %v667 = vpack.c.bf16 %v548, %v541
      %v668 = vpack.c.bf16 %v549, %v542
      %v669 = vpack.c.bf16 %v557, %v550
      %v670 = vpack.c.bf16 %v558, %v551
      %v671 = vpack.c.bf16 %v559, %v552
      %v672 = vpack.c.bf16 %v560, %v553
      %v673 = vpack.c.bf16 %v561, %v554
      %v674 = vpack.c.bf16 %v562, %v555
      %v675 = vpack.c.bf16 %v563, %v556
      %v676 = vld [vmem:[%s1] sm:$0xf]
      %v677 = vld [vmem:[%s1 + $0x4] sm:$0xf]
      %v678 = vld [vmem:[%s1 + $0x8] sm:$0xf]
      %v679 = vld [vmem:[%s1 + $0xc] sm:$0xf]
      %v680 = vld [vmem:[%s1 + $0x10] sm:$0xf]
      %v681 = vld [vmem:[%s1 + $0x14] sm:$0xf]
      %v682 = vld [vmem:[%s1 + $0x18] sm:$0xf]
      %v683 = vld [vmem:[%s1 + $0x1c] sm:$0xf]
      %v684 = vld [vmem:[%s1 + $0x20] sm:$0xf]
      %v685 = vld [vmem:[%s1 + $0x24] sm:$0xf]
      %v686 = vld [vmem:[%s1 + $0x28] sm:$0xf]
      %v687 = vld [vmem:[%s1 + $0x2c] sm:$0xf]
      %v688 = vld [vmem:[%s1 + $0x30] sm:$0xf]
      %v689 = vld [vmem:[%s1 + $0x34] sm:$0xf]
      %v690 = vld [vmem:[%s1 + $0x38] sm:$0xf]
      %v691 = vld [vmem:[%s1 + $0x3c] sm:$0xf]
      %v692 = vld [vmem:[%s1 + $0x40] sm:$0xf]
      %v693 = vld [vmem:[%s1 + $0x44] sm:$0xf]
      %v694 = vld [vmem:[%s1 + $0x48] sm:$0xf]
      %v695 = vld [vmem:[%s1 + $0x4c] sm:$0xf]
      %v696 = vld [vmem:[%s1 + $0x50] sm:$0xf]
      %v697 = vld [vmem:[%s1 + $0x54] sm:$0xf]
      %v698 = vld [vmem:[%s1 + $0x58] sm:$0xf]
      %v699 = vld [vmem:[%s1 + $0x5c] sm:$0xf]
      %v700 = vld [vmem:[%s1 + $0x60] sm:$0xf]
      %v701 = vld [vmem:[%s1 + $0x64] sm:$0xf]
      %v702 = vld [vmem:[%s1 + $0x68] sm:$0xf]
      %v703 = vld [vmem:[%s1 + $0x6c] sm:$0xf]
      %v704 = vld [vmem:[%s1 + $0x70] sm:$0xf]
      %v705 = vld [vmem:[%s1 + $0x74] sm:$0xf]
      %v706 = vld [vmem:[%s1 + $0x78] sm:$0xf]
      %v707 = vld [vmem:[%s1 + $0x7c] sm:$0xf]
      %v708 = vld [vmem:[%s1 + $0x80] sm:$0xf]
      %v709 = vld [vmem:[%s1 + $0x84] sm:$0xf]
      %v710 = vld [vmem:[%s1 + $0x88] sm:$0xf]
      %v711 = vld [vmem:[%s1 + $0x8c] sm:$0xf]
      %v712 = vld [vmem:[%s1 + $0x90] sm:$0xf]
      %v713 = vld [vmem:[%s1 + $0x94] sm:$0xf]
      %v714 = vld [vmem:[%s1 + $0x98] sm:$0xf]
      %v715 = vld [vmem:[%s1 + $0x9c] sm:$0xf]
      %v716 = vld [vmem:[%s1 + $0xa0] sm:$0xf]
      %v717 = vld [vmem:[%s1 + $0xa4] sm:$0xf]
      %v718 = vld [vmem:[%s1 + $0xa8] sm:$0xf]
      %v719 = vld [vmem:[%s1 + $0xac] sm:$0xf]
      %v720 = vld [vmem:[%s1 + $0xb0] sm:$0xf]
      %v721 = vld [vmem:[%s1 + $0xb4] sm:$0xf]
      %v722 = vld [vmem:[%s1 + $0xb8] sm:$0xf]
      %v723 = vld [vmem:[%s1 + $0xbc] sm:$0xf]
      %v724 = vld [vmem:[%s1 + $0xc0] sm:$0xf]
      %v725 = vld [vmem:[%s1 + $0xc4] sm:$0xf]
      %v726 = vld [vmem:[%s1 + $0xc8] sm:$0xf]
      %v727 = vld [vmem:[%s1 + $0xcc] sm:$0xf]
      %v728 = vld [vmem:[%s1 + $0xd0] sm:$0xf]
      %v729 = vld [vmem:[%s1 + $0xd4] sm:$0xf]
      %v730 = vld [vmem:[%s1 + $0xd8] sm:$0xf]
      %v731 = vld [vmem:[%s1 + $0xdc] sm:$0xf]
      %v732 = vld [vmem:[%s1 + $0xe0] sm:$0xf]
      %v733 = vld [vmem:[%s1 + $0xe4] sm:$0xf]
      %v734 = vld [vmem:[%s1 + $0xe8] sm:$0xf]
      %v735 = vld [vmem:[%s1 + $0xec] sm:$0xf]
      %v736 = vld [vmem:[%s1 + $0xf0] sm:$0xf]
      %v737 = vld [vmem:[%s1 + $0xf4] sm:$0xf]
      %v738 = vld [vmem:[%s1 + $0xf8] sm:$0xf]
      %v739 = vld [vmem:[%s1 + $0xfc] sm:$0xf]
      %v740 = vld [vmem:[%s1 + $0x100] sm:$0xf]
      %v741 = vld [vmem:[%s1 + $0x104] sm:$0xf]
      %v742 = vld [vmem:[%s1 + $0x108] sm:$0xf]
      %v743 = vld [vmem:[%s1 + $0x10c] sm:$0xf]
      %v744 = vld [vmem:[%s1 + $0x110] sm:$0xf]
      %v745 = vld [vmem:[%s1 + $0x114] sm:$0xf]
      %v746 = vld [vmem:[%s1 + $0x118] sm:$0xf]
      %v747 = vld [vmem:[%s1 + $0x11c] sm:$0xf]
      %v748 = vld [vmem:[%s1 + $0x120] sm:$0xf]
      %v749 = vld [vmem:[%s1 + $0x124] sm:$0xf]
      %v750 = vld [vmem:[%s1 + $0x128] sm:$0xf]
      %v751 = vld [vmem:[%s1 + $0x12c] sm:$0xf]
      %v752 = vld [vmem:[%s1 + $0x130] sm:$0xf]
      %v753 = vld [vmem:[%s1 + $0x134] sm:$0xf]
      %v754 = vld [vmem:[%s1 + $0x138] sm:$0xf]
      %v755 = vld [vmem:[%s1 + $0x13c] sm:$0xf]
      %v756 = vld [vmem:[%s1 + $0x140] sm:$0xf]
      %v757 = vld [vmem:[%s1 + $0x144] sm:$0xf]
      %v758 = vld [vmem:[%s1 + $0x148] sm:$0xf]
      %v759 = vld [vmem:[%s1 + $0x14c] sm:$0xf]
      %v760 = vld [vmem:[%s1 + $0x150] sm:$0xf]
      %v761 = vld [vmem:[%s1 + $0x154] sm:$0xf]
      %v762 = vld [vmem:[%s1 + $0x158] sm:$0xf]
      %v763 = vld [vmem:[%s1 + $0x15c] sm:$0xf]
      %v764 = vld [vmem:[%s1 + $0x160] sm:$0xf]
      %v765 = vld [vmem:[%s1 + $0x164] sm:$0xf]
      %v766 = vld [vmem:[%s1 + $0x168] sm:$0xf]
      %v767 = vld [vmem:[%s1 + $0x16c] sm:$0xf]
      %v768 = vld [vmem:[%s1 + $0x170] sm:$0xf]
      %v769 = vld [vmem:[%s1 + $0x174] sm:$0xf]
      %v770 = vld [vmem:[%s1 + $0x178] sm:$0xf]
      %v771 = vld [vmem:[%s1 + $0x17c] sm:$0xf]
      %v772 = vld [vmem:[%s1 + $0x180] sm:$0xf]
      %v773 = vld [vmem:[%s1 + $0x184] sm:$0xf]
      %v774 = vld [vmem:[%s2] sm:$0x1]
      %v776 = vperm.slane %v774, 0
      %v876 = vunpack.c.l.b16 %v676
      %v877 = vunpack.c.l.b16 %v677
      %v878 = vunpack.c.l.b16 %v678
      %v879 = vunpack.c.l.b16 %v679
      %v880 = vunpack.c.l.b16 %v680
      %v881 = vunpack.c.l.b16 %v681
      %v882 = vunpack.c.l.b16 %v682
      %v883 = vunpack.c.l.b16 %v683
      %v884 = vunpack.c.l.b16 %v684
      %v885 = vunpack.c.l.b16 %v685
      %v886 = vunpack.c.l.b16 %v686
      %v887 = vunpack.c.l.b16 %v687
      %v888 = vunpack.c.l.b16 %v688
      %v889 = vunpack.c.l.b16 %v689
      %v890 = vunpack.c.l.b16 %v690
      %v891 = vunpack.c.l.b16 %v691
      %v892 = vunpack.c.l.b16 %v692
      %v893 = vunpack.c.l.b16 %v693
      %v894 = vunpack.c.l.b16 %v694
      %v895 = vunpack.c.l.b16 %v695
      %v896 = vunpack.c.l.b16 %v696
      %v897 = vunpack.c.l.b16 %v697
      %v898 = vunpack.c.l.b16 %v698
      %v899 = vunpack.c.l.b16 %v699
      %v900 = vunpack.c.l.b16 %v700
      %v901 = vunpack.c.l.b16 %v701
      %v902 = vunpack.c.l.b16 %v702
      %v903 = vunpack.c.l.b16 %v703
      %v904 = vunpack.c.l.b16 %v704
      %v905 = vunpack.c.l.b16 %v705
      %v906 = vunpack.c.l.b16 %v706
      %v907 = vunpack.c.l.b16 %v707
      %v908 = vunpack.c.l.b16 %v708
      %v909 = vunpack.c.l.b16 %v709
      %v910 = vunpack.c.l.b16 %v710
      %v911 = vunpack.c.l.b16 %v711
      %v912 = vunpack.c.l.b16 %v712
      %v913 = vunpack.c.l.b16 %v713
      %v914 = vunpack.c.l.b16 %v714
      %v915 = vunpack.c.l.b16 %v715
      %v916 = vunpack.c.l.b16 %v716
      %v917 = vunpack.c.l.b16 %v717
      %v918 = vunpack.c.l.b16 %v718
      %v919 = vunpack.c.l.b16 %v719
      %v920 = vunpack.c.l.b16 %v720
      %v921 = vunpack.c.l.b16 %v721
      %v922 = vunpack.c.l.b16 %v722
      %v923 = vunpack.c.l.b16 %v723
      %v924 = vunpack.c.l.b16 %v724
      %v925 = vunpack.c.l.b16 %v725
      %v926 = vunpack.c.l.b16 %v726
      %v927 = vunpack.c.l.b16 %v727
      %v928 = vunpack.c.l.b16 %v728
      %v929 = vunpack.c.l.b16 %v729
      %v930 = vunpack.c.l.b16 %v730
      %v931 = vunpack.c.l.b16 %v731
      %v932 = vunpack.c.l.b16 %v732
      %v933 = vunpack.c.l.b16 %v733
      %v934 = vunpack.c.l.b16 %v734
      %v935 = vunpack.c.l.b16 %v735
      %v936 = vunpack.c.l.b16 %v736
      %v937 = vunpack.c.l.b16 %v737
      %v938 = vunpack.c.l.b16 %v738
      %v939 = vunpack.c.l.b16 %v739
      %v940 = vunpack.c.l.b16 %v740
      %v941 = vunpack.c.l.b16 %v741
      %v942 = vunpack.c.l.b16 %v742
      %v943 = vunpack.c.l.b16 %v743
      %v944 = vunpack.c.l.b16 %v744
      %v945 = vunpack.c.l.b16 %v745
      %v946 = vunpack.c.l.b16 %v746
      %v947 = vunpack.c.l.b16 %v747
      %v948 = vunpack.c.l.b16 %v748
      %v949 = vunpack.c.l.b16 %v749
      %v950 = vunpack.c.l.b16 %v750
      %v951 = vunpack.c.l.b16 %v751
      %v952 = vunpack.c.l.b16 %v752
      %v953 = vunpack.c.l.b16 %v753
      %v954 = vunpack.c.l.b16 %v754
      %v955 = vunpack.c.l.b16 %v755
      %v956 = vunpack.c.l.b16 %v756
      %v957 = vunpack.c.l.b16 %v757
      %v958 = vunpack.c.l.b16 %v758
      %v959 = vunpack.c.l.b16 %v759
      %v960 = vunpack.c.l.b16 %v760
      %v961 = vunpack.c.l.b16 %v761
      %v962 = vunpack.c.l.b16 %v762
      %v963 = vunpack.c.l.b16 %v763
      %v964 = vunpack.c.l.b16 %v764
      %v965 = vunpack.c.l.b16 %v765
      %v966 = vunpack.c.l.b16 %v766
      %v967 = vunpack.c.l.b16 %v767
      %v968 = vunpack.c.l.b16 %v768
      %v969 = vunpack.c.l.b16 %v769
      %v970 = vunpack.c.l.b16 %v770
      %v971 = vunpack.c.l.b16 %v771
      %v972 = vunpack.c.l.b16 %v772
      %v973 = vunpack.c.l.b16 %v773
      %v974 = vpack.c.b16 %v877, %v876
      %v975 = vpack.c.b16 %v879, %v878
      %v976 = vpack.c.b16 %v881, %v880
      %v977 = vpack.c.b16 %v883, %v882
      %v978 = vpack.c.b16 %v885, %v884
      %v979 = vpack.c.b16 %v887, %v886
      %v980 = vpack.c.b16 %v889, %v888
      %v981 = vpack.c.b16 %v891, %v890
      %v982 = vpack.c.b16 %v893, %v892
      %v983 = vpack.c.b16 %v895, %v894
      %v984 = vpack.c.b16 %v897, %v896
      %v985 = vpack.c.b16 %v899, %v898
      %v986 = vpack.c.b16 %v901, %v900
      %v987 = vpack.c.b16 %v903, %v902
      %v988 = vpack.c.b16 %v905, %v904
      %v989 = vpack.c.b16 %v907, %v906
      %v990 = vpack.c.b16 %v909, %v908
      %v991 = vpack.c.b16 %v911, %v910
      %v992 = vpack.c.b16 %v913, %v912
      %v993 = vpack.c.b16 %v915, %v914
      %v994 = vpack.c.b16 %v917, %v916
      %v995 = vpack.c.b16 %v919, %v918
      %v996 = vpack.c.b16 %v921, %v920
      %v997 = vpack.c.b16 %v923, %v922
      %v998 = vpack.c.b16 %v925, %v924
      %v999 = vpack.c.b16 %v927, %v926
      %v1000 = vpack.c.b16 %v929, %v928
      %v1001 = vpack.c.b16 %v931, %v930
      %v1002 = vpack.c.b16 %v933, %v932
      %v1003 = vpack.c.b16 %v935, %v934
      %v1004 = vpack.c.b16 %v937, %v936
      %v1005 = vpack.c.b16 %v939, %v938
      %v1006 = vpack.c.b16 %v941, %v940
      %v1007 = vpack.c.b16 %v943, %v942
      %v1008 = vpack.c.b16 %v945, %v944
      %v1009 = vpack.c.b16 %v947, %v946
      %v1010 = vpack.c.b16 %v949, %v948
      %v1011 = vpack.c.b16 %v951, %v950
      %v1012 = vpack.c.b16 %v953, %v952
      %v1013 = vpack.c.b16 %v955, %v954
      %v1014 = vpack.c.b16 %v957, %v956
      %v1015 = vpack.c.b16 %v959, %v958
      %v1016 = vpack.c.b16 %v961, %v960
      %v1017 = vpack.c.b16 %v963, %v962
      %v1018 = vpack.c.b16 %v965, %v964
      %v1019 = vpack.c.b16 %v967, %v966
      %v1020 = vpack.c.b16 %v969, %v968
      %v1021 = vpack.c.b16 %v971, %v970
      %v1022 = vpack.c.b16 %v973, %v972
      %vm1072 = vcmask 130048
      %v1074 = vsel %vm1072, %v570, 0
      %v1077 = vsel %vm1072, %v577, 0
      %v1080 = vsel %vm1072, %v584, 0
      %v1083 = vsel %vm1072, %v591, 0
      %v1086 = vsel %vm1072, %v598, 0
      %v1089 = vsel %vm1072, %v605, 0
      %v1092 = vsel %vm1072, %v612, 0
      %v1095 = vsel %vm1072, %v619, 0
      %v1098 = vsel %vm1072, %v626, 0
      %v1101 = vsel %vm1072, %v633, 0
      %v1104 = vsel %vm1072, %v640, 0
      %v1107 = vsel %vm1072, %v647, 0
      %v1110 = vsel %vm1072, %v654, 0
      %v1113 = vsel %vm1072, %v661, 0
      %v1116 = vsel %vm1072, %v668, 0
      %v1119 = vsel %vm1072, %v675, 0
      %1121 = vmatpush.bf16.msra.mxu0 %v981
      %1122 = vmatpush.bf16.msra.mxu0 %v980
      %1123 = vmatpush.bf16.msra.mxu0 %v979
      %1124 = vmatpush.bf16.msra.mxu0 %v978
      %1125 = vmatpush.bf16.msra.mxu0 %v977
      %1126 = vmatpush.bf16.msra.mxu0 %v976
      %1127 = vmatpush.bf16.msra.mxu0 %v975
      %1128 = vmatpush.bf16.msra.mxu0 %v974
      %1129 = vmatmul.bf16.gmra.mxu0 %v564
      %v1130 = vpop.f32.mrf.mxu0
      %v1131 = vadd.f32 %v776, %v1130
      %v1132 = vpop.f32.mrf.mxu0
      %v1133 = vadd.f32 %v776, %v1132
      %1134 = vmatmul.bf16.gmra.mxu0 %v571
      %v1135 = vpop.f32.mrf.mxu0
      %v1136 = vadd.f32 %v776, %v1135
      %v1137 = vpop.f32.mrf.mxu0
      %v1138 = vadd.f32 %v776, %v1137
      %1139 = vmatmul.bf16.gmra.mxu0 %v578
      %v1140 = vpop.f32.mrf.mxu0
      %v1141 = vadd.f32 %v776, %v1140
      %v1142 = vpop.f32.mrf.mxu0
      %v1143 = vadd.f32 %v776, %v1142
      %1144 = vmatmul.bf16.gmra.mxu0 %v585
      %v1145 = vpop.f32.mrf.mxu0
      %v1146 = vadd.f32 %v776, %v1145
      %v1147 = vpop.f32.mrf.mxu0
      %v1148 = vadd.f32 %v776, %v1147
      %1149 = vmatmul.bf16.gmra.mxu0 %v592
      %v1150 = vpop.f32.mrf.mxu0
      %v1151 = vadd.f32 %v776, %v1150
      %v1152 = vpop.f32.mrf.mxu0
      %v1153 = vadd.f32 %v776, %v1152
      %1154 = vmatmul.bf16.gmra.mxu0 %v599
      %v1155 = vpop.f32.mrf.mxu0
      %v1156 = vadd.f32 %v776, %v1155
      %v1157 = vpop.f32.mrf.mxu0
      %v1158 = vadd.f32 %v776, %v1157
      %1159 = vmatmul.bf16.gmra.mxu0 %v606
      %v1160 = vpop.f32.mrf.mxu0
      %v1161 = vadd.f32 %v776, %v1160
      %v1162 = vpop.f32.mrf.mxu0
      %v1163 = vadd.f32 %v776, %v1162
      %1164 = vmatmul.bf16.gmra.mxu0 %v613
      %v1165 = vpop.f32.mrf.mxu0
      %v1166 = vadd.f32 %v776, %v1165
      %v1167 = vpop.f32.mrf.mxu0
      %v1168 = vadd.f32 %v776, %v1167
      %1169 = vmatmul.bf16.gmra.mxu0 %v620
      %v1170 = vpop.f32.mrf.mxu0
      %v1171 = vadd.f32 %v776, %v1170
      %v1172 = vpop.f32.mrf.mxu0
      %v1173 = vadd.f32 %v776, %v1172
      %1174 = vmatmul.bf16.gmra.mxu0 %v627
      %v1175 = vpop.f32.mrf.mxu0
      %v1176 = vadd.f32 %v776, %v1175
      %v1177 = vpop.f32.mrf.mxu0
      %v1178 = vadd.f32 %v776, %v1177
      %1179 = vmatmul.bf16.gmra.mxu0 %v634
      %v1180 = vpop.f32.mrf.mxu0
      %v1181 = vadd.f32 %v776, %v1180
      %v1182 = vpop.f32.mrf.mxu0
      %v1183 = vadd.f32 %v776, %v1182
      %1184 = vmatmul.bf16.gmra.mxu0 %v641
      %v1185 = vpop.f32.mrf.mxu0
      %v1186 = vadd.f32 %v776, %v1185
      %v1187 = vpop.f32.mrf.mxu0
      %v1188 = vadd.f32 %v776, %v1187
      %1189 = vmatmul.bf16.gmra.mxu0 %v648
      %v1190 = vpop.f32.mrf.mxu0
      %v1191 = vadd.f32 %v776, %v1190
      %v1192 = vpop.f32.mrf.mxu0
      %v1193 = vadd.f32 %v776, %v1192
      %1194 = vmatmul.bf16.gmra.mxu0 %v655
      %v1195 = vpop.f32.mrf.mxu0
      %v1196 = vadd.f32 %v776, %v1195
      %v1197 = vpop.f32.mrf.mxu0
      %v1198 = vadd.f32 %v776, %v1197
      %1199 = vmatmul.bf16.gmra.mxu0 %v662
      %v1200 = vpop.f32.mrf.mxu0
      %v1201 = vadd.f32 %v776, %v1200
      %v1202 = vpop.f32.mrf.mxu0
      %v1203 = vadd.f32 %v776, %v1202
      %1204 = vmatmul.bf16.gmra.mxu0 %v669
      %v1205 = vpop.f32.mrf.mxu0
      %v1206 = vadd.f32 %v776, %v1205
      %v1207 = vpop.f32.mrf.mxu0
      %v1208 = vadd.f32 %v776, %v1207
      %1209 = vdwg.mxu0
      %1210 = vmatpush.bf16.msra.mxu0 %v989
      %1211 = vmatpush.bf16.msra.mxu0 %v988
      %1212 = vmatpush.bf16.msra.mxu0 %v987
      %1213 = vmatpush.bf16.msra.mxu0 %v986
      %1214 = vmatpush.bf16.msra.mxu0 %v985
      %1215 = vmatpush.bf16.msra.mxu0 %v984
      %1216 = vmatpush.bf16.msra.mxu0 %v983
      %1217 = vmatpush.bf16.msra.mxu0 %v982
      %1218 = vmatmul.bf16.gmra.mxu0 %v565
      %v1219 = vpop.f32.mrf.mxu0
      %v1220 = vadd.f32 %v1131, %v1219
      %v1221 = vpop.f32.mrf.mxu0
      %v1222 = vadd.f32 %v1133, %v1221
      %1223 = vmatmul.bf16.gmra.mxu0 %v572
      %v1224 = vpop.f32.mrf.mxu0
      %v1225 = vadd.f32 %v1136, %v1224
      %v1226 = vpop.f32.mrf.mxu0
      %v1227 = vadd.f32 %v1138, %v1226
      %1228 = vmatmul.bf16.gmra.mxu0 %v579
      %v1229 = vpop.f32.mrf.mxu0
      %v1230 = vadd.f32 %v1141, %v1229
      %v1231 = vpop.f32.mrf.mxu0
      %v1232 = vadd.f32 %v1143, %v1231
      %1233 = vmatmul.bf16.gmra.mxu0 %v586
      %v1234 = vpop.f32.mrf.mxu0
      %v1235 = vadd.f32 %v1146, %v1234
      %v1236 = vpop.f32.mrf.mxu0
      %v1237 = vadd.f32 %v1148, %v1236
      %1238 = vmatmul.bf16.gmra.mxu0 %v593
      %v1239 = vpop.f32.mrf.mxu0
      %v1240 = vadd.f32 %v1151, %v1239
      %v1241 = vpop.f32.mrf.mxu0
      %v1242 = vadd.f32 %v1153, %v1241
      %1243 = vmatmul.bf16.gmra.mxu0 %v600
      %v1244 = vpop.f32.mrf.mxu0
      %v1245 = vadd.f32 %v1156, %v1244
      %v1246 = vpop.f32.mrf.mxu0
      %v1247 = vadd.f32 %v1158, %v1246
      %1248 = vmatmul.bf16.gmra.mxu0 %v607
      %v1249 = vpop.f32.mrf.mxu0
      %v1250 = vadd.f32 %v1161, %v1249
      %v1251 = vpop.f32.mrf.mxu0
      %v1252 = vadd.f32 %v1163, %v1251
      %1253 = vmatmul.bf16.gmra.mxu0 %v614
      %v1254 = vpop.f32.mrf.mxu0
      %v1255 = vadd.f32 %v1166, %v1254
      %v1256 = vpop.f32.mrf.mxu0
      %v1257 = vadd.f32 %v1168, %v1256
      %1258 = vmatmul.bf16.gmra.mxu0 %v621
      %v1259 = vpop.f32.mrf.mxu0
      %v1260 = vadd.f32 %v1171, %v1259
      %v1261 = vpop.f32.mrf.mxu0
      %v1262 = vadd.f32 %v1173, %v1261
      %1263 = vmatmul.bf16.gmra.mxu0 %v628
      %v1264 = vpop.f32.mrf.mxu0
      %v1265 = vadd.f32 %v1176, %v1264
      %v1266 = vpop.f32.mrf.mxu0
      %v1267 = vadd.f32 %v1178, %v1266
      %1268 = vmatmul.bf16.gmra.mxu0 %v635
      %v1269 = vpop.f32.mrf.mxu0
      %v1270 = vadd.f32 %v1181, %v1269
      %v1271 = vpop.f32.mrf.mxu0
      %v1272 = vadd.f32 %v1183, %v1271
      %1273 = vmatmul.bf16.gmra.mxu0 %v642
      %v1274 = vpop.f32.mrf.mxu0
      %v1275 = vadd.f32 %v1186, %v1274
      %v1276 = vpop.f32.mrf.mxu0
      %v1277 = vadd.f32 %v1188, %v1276
      %1278 = vmatmul.bf16.gmra.mxu0 %v649
      %v1279 = vpop.f32.mrf.mxu0
      %v1280 = vadd.f32 %v1191, %v1279
      %v1281 = vpop.f32.mrf.mxu0
      %v1282 = vadd.f32 %v1193, %v1281
      %1283 = vmatmul.bf16.gmra.mxu0 %v656
      %v1284 = vpop.f32.mrf.mxu0
      %v1285 = vadd.f32 %v1196, %v1284
      %v1286 = vpop.f32.mrf.mxu0
      %v1287 = vadd.f32 %v1198, %v1286
      %1288 = vmatmul.bf16.gmra.mxu0 %v663
      %v1289 = vpop.f32.mrf.mxu0
      %v1290 = vadd.f32 %v1201, %v1289
      %v1291 = vpop.f32.mrf.mxu0
      %v1292 = vadd.f32 %v1203, %v1291
      %1293 = vmatmul.bf16.gmra.mxu0 %v670
      %v1294 = vpop.f32.mrf.mxu0
      %v1295 = vadd.f32 %v1206, %v1294
      %v1296 = vpop.f32.mrf.mxu0
      %v1297 = vadd.f32 %v1208, %v1296
      %1298 = vdwg.mxu0
      %1299 = vmatpush.bf16.msra.mxu0 %v997
      %1300 = vmatpush.bf16.msra.mxu0 %v996
      %1301 = vmatpush.bf16.msra.mxu0 %v995
      %1302 = vmatpush.bf16.msra.mxu0 %v994
      %1303 = vmatpush.bf16.msra.mxu0 %v993
      %1304 = vmatpush.bf16.msra.mxu0 %v992
      %1305 = vmatpush.bf16.msra.mxu0 %v991
      %1306 = vmatpush.bf16.msra.mxu0 %v990
      %1307 = vmatmul.bf16.gmra.mxu0 %v566
      %v1308 = vpop.f32.mrf.mxu0
      %v1309 = vadd.f32 %v1220, %v1308
      %v1310 = vpop.f32.mrf.mxu0
      %v1311 = vadd.f32 %v1222, %v1310
      %1312 = vmatmul.bf16.gmra.mxu0 %v573
      %v1313 = vpop.f32.mrf.mxu0
      %v1314 = vadd.f32 %v1225, %v1313
      %v1315 = vpop.f32.mrf.mxu0
      %v1316 = vadd.f32 %v1227, %v1315
      %1317 = vmatmul.bf16.gmra.mxu0 %v580
      %v1318 = vpop.f32.mrf.mxu0
      %v1319 = vadd.f32 %v1230, %v1318
      %v1320 = vpop.f32.mrf.mxu0
      %v1321 = vadd.f32 %v1232, %v1320
      %1322 = vmatmul.bf16.gmra.mxu0 %v587
      %v1323 = vpop.f32.mrf.mxu0
      %v1324 = vadd.f32 %v1235, %v1323
      %v1325 = vpop.f32.mrf.mxu0
      %v1326 = vadd.f32 %v1237, %v1325
      %1327 = vmatmul.bf16.gmra.mxu0 %v594
      %v1328 = vpop.f32.mrf.mxu0
      %v1329 = vadd.f32 %v1240, %v1328
      %v1330 = vpop.f32.mrf.mxu0
      %v1331 = vadd.f32 %v1242, %v1330
      %1332 = vmatmul.bf16.gmra.mxu0 %v601
      %v1333 = vpop.f32.mrf.mxu0
      %v1334 = vadd.f32 %v1245, %v1333
      %v1335 = vpop.f32.mrf.mxu0
      %v1336 = vadd.f32 %v1247, %v1335
      %1337 = vmatmul.bf16.gmra.mxu0 %v608
      %v1338 = vpop.f32.mrf.mxu0
      %v1339 = vadd.f32 %v1250, %v1338
      %v1340 = vpop.f32.mrf.mxu0
      %v1341 = vadd.f32 %v1252, %v1340
      %1342 = vmatmul.bf16.gmra.mxu0 %v615
      %v1343 = vpop.f32.mrf.mxu0
      %v1344 = vadd.f32 %v1255, %v1343
      %v1345 = vpop.f32.mrf.mxu0
      %v1346 = vadd.f32 %v1257, %v1345
      %1347 = vmatmul.bf16.gmra.mxu0 %v622
      %v1348 = vpop.f32.mrf.mxu0
      %v1349 = vadd.f32 %v1260, %v1348
      %v1350 = vpop.f32.mrf.mxu0
      %v1351 = vadd.f32 %v1262, %v1350
      %1352 = vmatmul.bf16.gmra.mxu0 %v629
      %v1353 = vpop.f32.mrf.mxu0
      %v1354 = vadd.f32 %v1265, %v1353
      %v1355 = vpop.f32.mrf.mxu0
      %v1356 = vadd.f32 %v1267, %v1355
      %1357 = vmatmul.bf16.gmra.mxu0 %v636
      %v1358 = vpop.f32.mrf.mxu0
      %v1359 = vadd.f32 %v1270, %v1358
      %v1360 = vpop.f32.mrf.mxu0
      %v1361 = vadd.f32 %v1272, %v1360
      %1362 = vmatmul.bf16.gmra.mxu0 %v643
      %v1363 = vpop.f32.mrf.mxu0
      %v1364 = vadd.f32 %v1275, %v1363
      %v1365 = vpop.f32.mrf.mxu0
      %v1366 = vadd.f32 %v1277, %v1365
      %1367 = vmatmul.bf16.gmra.mxu0 %v650
      %v1368 = vpop.f32.mrf.mxu0
      %v1369 = vadd.f32 %v1280, %v1368
      %v1370 = vpop.f32.mrf.mxu0
      %v1371 = vadd.f32 %v1282, %v1370
      %1372 = vmatmul.bf16.gmra.mxu0 %v657
      %v1373 = vpop.f32.mrf.mxu0
      %v1374 = vadd.f32 %v1285, %v1373
      %v1375 = vpop.f32.mrf.mxu0
      %v1376 = vadd.f32 %v1287, %v1375
      %1377 = vmatmul.bf16.gmra.mxu0 %v664
      %v1378 = vpop.f32.mrf.mxu0
      %v1379 = vadd.f32 %v1290, %v1378
      %v1380 = vpop.f32.mrf.mxu0
      %v1381 = vadd.f32 %v1292, %v1380
      %1382 = vmatmul.bf16.gmra.mxu0 %v671
      %v1383 = vpop.f32.mrf.mxu0
      %v1384 = vadd.f32 %v1295, %v1383
      %v1385 = vpop.f32.mrf.mxu0
      %v1386 = vadd.f32 %v1297, %v1385
      %1387 = vdwg.mxu0
      %1388 = vmatpush.bf16.msra.mxu0 %v1005
      %1389 = vmatpush.bf16.msra.mxu0 %v1004
      %1390 = vmatpush.bf16.msra.mxu0 %v1003
      %1391 = vmatpush.bf16.msra.mxu0 %v1002
      %1392 = vmatpush.bf16.msra.mxu0 %v1001
      %1393 = vmatpush.bf16.msra.mxu0 %v1000
      %1394 = vmatpush.bf16.msra.mxu0 %v999
      %1395 = vmatpush.bf16.msra.mxu0 %v998
      %1396 = vmatmul.bf16.gmra.mxu0 %v567
      %v1397 = vpop.f32.mrf.mxu0
      %v1398 = vadd.f32 %v1309, %v1397
      %v1399 = vpop.f32.mrf.mxu0
      %v1400 = vadd.f32 %v1311, %v1399
      %1401 = vmatmul.bf16.gmra.mxu0 %v574
      %v1402 = vpop.f32.mrf.mxu0
      %v1403 = vadd.f32 %v1314, %v1402
      %v1404 = vpop.f32.mrf.mxu0
      %v1405 = vadd.f32 %v1316, %v1404
      %1406 = vmatmul.bf16.gmra.mxu0 %v581
      %v1407 = vpop.f32.mrf.mxu0
      %v1408 = vadd.f32 %v1319, %v1407
      %v1409 = vpop.f32.mrf.mxu0
      %v1410 = vadd.f32 %v1321, %v1409
      %1411 = vmatmul.bf16.gmra.mxu0 %v588
      %v1412 = vpop.f32.mrf.mxu0
      %v1413 = vadd.f32 %v1324, %v1412
      %v1414 = vpop.f32.mrf.mxu0
      %v1415 = vadd.f32 %v1326, %v1414
      %1416 = vmatmul.bf16.gmra.mxu0 %v595
      %v1417 = vpop.f32.mrf.mxu0
      %v1418 = vadd.f32 %v1329, %v1417
      %v1419 = vpop.f32.mrf.mxu0
      %v1420 = vadd.f32 %v1331, %v1419
      %1421 = vmatmul.bf16.gmra.mxu0 %v602
      %v1422 = vpop.f32.mrf.mxu0
      %v1423 = vadd.f32 %v1334, %v1422
      %v1424 = vpop.f32.mrf.mxu0
      %v1425 = vadd.f32 %v1336, %v1424
      %1426 = vmatmul.bf16.gmra.mxu0 %v609
      %v1427 = vpop.f32.mrf.mxu0
      %v1428 = vadd.f32 %v1339, %v1427
      %v1429 = vpop.f32.mrf.mxu0
      %v1430 = vadd.f32 %v1341, %v1429
      %1431 = vmatmul.bf16.gmra.mxu0 %v616
      %v1432 = vpop.f32.mrf.mxu0
      %v1433 = vadd.f32 %v1344, %v1432
      %v1434 = vpop.f32.mrf.mxu0
      %v1435 = vadd.f32 %v1346, %v1434
      %1436 = vmatmul.bf16.gmra.mxu0 %v623
      %v1437 = vpop.f32.mrf.mxu0
      %v1438 = vadd.f32 %v1349, %v1437
      %v1439 = vpop.f32.mrf.mxu0
      %v1440 = vadd.f32 %v1351, %v1439
      %1441 = vmatmul.bf16.gmra.mxu0 %v630
      %v1442 = vpop.f32.mrf.mxu0
      %v1443 = vadd.f32 %v1354, %v1442
      %v1444 = vpop.f32.mrf.mxu0
      %v1445 = vadd.f32 %v1356, %v1444
      %1446 = vmatmul.bf16.gmra.mxu0 %v637
      %v1447 = vpop.f32.mrf.mxu0
      %v1448 = vadd.f32 %v1359, %v1447
      %v1449 = vpop.f32.mrf.mxu0
      %v1450 = vadd.f32 %v1361, %v1449
      %1451 = vmatmul.bf16.gmra.mxu0 %v644
      %v1452 = vpop.f32.mrf.mxu0
      %v1453 = vadd.f32 %v1364, %v1452
      %v1454 = vpop.f32.mrf.mxu0
      %v1455 = vadd.f32 %v1366, %v1454
      %1456 = vmatmul.bf16.gmra.mxu0 %v651
      %v1457 = vpop.f32.mrf.mxu0
      %v1458 = vadd.f32 %v1369, %v1457
      %v1459 = vpop.f32.mrf.mxu0
      %v1460 = vadd.f32 %v1371, %v1459
      %1461 = vmatmul.bf16.gmra.mxu0 %v658
      %v1462 = vpop.f32.mrf.mxu0
      %v1463 = vadd.f32 %v1374, %v1462
      %v1464 = vpop.f32.mrf.mxu0
      %v1465 = vadd.f32 %v1376, %v1464
      %1466 = vmatmul.bf16.gmra.mxu0 %v665
      %v1467 = vpop.f32.mrf.mxu0
      %v1468 = vadd.f32 %v1379, %v1467
      %v1469 = vpop.f32.mrf.mxu0
      %v1470 = vadd.f32 %v1381, %v1469
      %1471 = vmatmul.bf16.gmra.mxu0 %v672
      %v1472 = vpop.f32.mrf.mxu0
      %v1473 = vadd.f32 %v1384, %v1472
      %v1474 = vpop.f32.mrf.mxu0
      %v1475 = vadd.f32 %v1386, %v1474
      %1476 = vdwg.mxu0
      %1477 = vmatpush.bf16.msra.mxu0 %v1013
      %1478 = vmatpush.bf16.msra.mxu0 %v1012
      %1479 = vmatpush.bf16.msra.mxu0 %v1011
      %1480 = vmatpush.bf16.msra.mxu0 %v1010
      %1481 = vmatpush.bf16.msra.mxu0 %v1009
      %1482 = vmatpush.bf16.msra.mxu0 %v1008
      %1483 = vmatpush.bf16.msra.mxu0 %v1007
      %1484 = vmatpush.bf16.msra.mxu0 %v1006
      %1485 = vmatmul.bf16.gmra.mxu0 %v568
      %v1486 = vpop.f32.mrf.mxu0
      %v1487 = vadd.f32 %v1398, %v1486
      %v1488 = vpop.f32.mrf.mxu0
      %v1489 = vadd.f32 %v1400, %v1488
      %1490 = vmatmul.bf16.gmra.mxu0 %v575
      %v1491 = vpop.f32.mrf.mxu0
      %v1492 = vadd.f32 %v1403, %v1491
      %v1493 = vpop.f32.mrf.mxu0
      %v1494 = vadd.f32 %v1405, %v1493
      %1495 = vmatmul.bf16.gmra.mxu0 %v582
      %v1496 = vpop.f32.mrf.mxu0
      %v1497 = vadd.f32 %v1408, %v1496
      %v1498 = vpop.f32.mrf.mxu0
      %v1499 = vadd.f32 %v1410, %v1498
      %1500 = vmatmul.bf16.gmra.mxu0 %v589
      %v1501 = vpop.f32.mrf.mxu0
      %v1502 = vadd.f32 %v1413, %v1501
      %v1503 = vpop.f32.mrf.mxu0
      %v1504 = vadd.f32 %v1415, %v1503
      %1505 = vmatmul.bf16.gmra.mxu0 %v596
      %v1506 = vpop.f32.mrf.mxu0
      %v1507 = vadd.f32 %v1418, %v1506
      %v1508 = vpop.f32.mrf.mxu0
      %v1509 = vadd.f32 %v1420, %v1508
      %1510 = vmatmul.bf16.gmra.mxu0 %v603
      %v1511 = vpop.f32.mrf.mxu0
      %v1512 = vadd.f32 %v1423, %v1511
      %v1513 = vpop.f32.mrf.mxu0
      %v1514 = vadd.f32 %v1425, %v1513
      %1515 = vmatmul.bf16.gmra.mxu0 %v610
      %v1516 = vpop.f32.mrf.mxu0
      %v1517 = vadd.f32 %v1428, %v1516
      %v1518 = vpop.f32.mrf.mxu0
      %v1519 = vadd.f32 %v1430, %v1518
      %1520 = vmatmul.bf16.gmra.mxu0 %v617
      %v1521 = vpop.f32.mrf.mxu0
      %v1522 = vadd.f32 %v1433, %v1521
      %v1523 = vpop.f32.mrf.mxu0
      %v1524 = vadd.f32 %v1435, %v1523
      %1525 = vmatmul.bf16.gmra.mxu0 %v624
      %v1526 = vpop.f32.mrf.mxu0
      %v1527 = vadd.f32 %v1438, %v1526
      %v1528 = vpop.f32.mrf.mxu0
      %v1529 = vadd.f32 %v1440, %v1528
      %1530 = vmatmul.bf16.gmra.mxu0 %v631
      %v1531 = vpop.f32.mrf.mxu0
      %v1532 = vadd.f32 %v1443, %v1531
      %v1533 = vpop.f32.mrf.mxu0
      %v1534 = vadd.f32 %v1445, %v1533
      %1535 = vmatmul.bf16.gmra.mxu0 %v638
      %v1536 = vpop.f32.mrf.mxu0
      %v1537 = vadd.f32 %v1448, %v1536
      %v1538 = vpop.f32.mrf.mxu0
      %v1539 = vadd.f32 %v1450, %v1538
      %1540 = vmatmul.bf16.gmra.mxu0 %v645
      %v1541 = vpop.f32.mrf.mxu0
      %v1542 = vadd.f32 %v1453, %v1541
      %v1543 = vpop.f32.mrf.mxu0
      %v1544 = vadd.f32 %v1455, %v1543
      %1545 = vmatmul.bf16.gmra.mxu0 %v652
      %v1546 = vpop.f32.mrf.mxu0
      %v1547 = vadd.f32 %v1458, %v1546
      %v1548 = vpop.f32.mrf.mxu0
      %v1549 = vadd.f32 %v1460, %v1548
      %1550 = vmatmul.bf16.gmra.mxu0 %v659
      %v1551 = vpop.f32.mrf.mxu0
      %v1552 = vadd.f32 %v1463, %v1551
      %v1553 = vpop.f32.mrf.mxu0
      %v1554 = vadd.f32 %v1465, %v1553
      %1555 = vmatmul.bf16.gmra.mxu0 %v666
      %v1556 = vpop.f32.mrf.mxu0
      %v1557 = vadd.f32 %v1468, %v1556
      %v1558 = vpop.f32.mrf.mxu0
      %v1559 = vadd.f32 %v1470, %v1558
      %1560 = vmatmul.bf16.gmra.mxu0 %v673
      %v1561 = vpop.f32.mrf.mxu0
      %v1562 = vadd.f32 %v1473, %v1561
      %v1563 = vpop.f32.mrf.mxu0
      %v1564 = vadd.f32 %v1475, %v1563
      %1565 = vdwg.mxu0
      %1566 = vmatpush.bf16.msra.mxu0 %v1021
      %1567 = vmatpush.bf16.msra.mxu0 %v1020
      %1568 = vmatpush.bf16.msra.mxu0 %v1019
      %1569 = vmatpush.bf16.msra.mxu0 %v1018
      %1570 = vmatpush.bf16.msra.mxu0 %v1017
      %1571 = vmatpush.bf16.msra.mxu0 %v1016
      %1572 = vmatpush.bf16.msra.mxu0 %v1015
      %1573 = vmatpush.bf16.msra.mxu0 %v1014
      %1574 = vmatmul.bf16.gmra.mxu0 %v569
      %v1575 = vpop.f32.mrf.mxu0
      %v1576 = vadd.f32 %v1487, %v1575
      %v1577 = vpop.f32.mrf.mxu0
      %v1578 = vadd.f32 %v1489, %v1577
      %1579 = vmatmul.bf16.gmra.mxu0 %v576
      %v1580 = vpop.f32.mrf.mxu0
      %v1581 = vadd.f32 %v1492, %v1580
      %v1582 = vpop.f32.mrf.mxu0
      %v1583 = vadd.f32 %v1494, %v1582
      %1584 = vmatmul.bf16.gmra.mxu0 %v583
      %v1585 = vpop.f32.mrf.mxu0
      %v1586 = vadd.f32 %v1497, %v1585
      %v1587 = vpop.f32.mrf.mxu0
      %v1588 = vadd.f32 %v1499, %v1587
      %1589 = vmatmul.bf16.gmra.mxu0 %v590
      %v1590 = vpop.f32.mrf.mxu0
      %v1591 = vadd.f32 %v1502, %v1590
      %v1592 = vpop.f32.mrf.mxu0
      %v1593 = vadd.f32 %v1504, %v1592
      %1594 = vmatmul.bf16.gmra.mxu0 %v597
      %v1595 = vpop.f32.mrf.mxu0
      %v1596 = vadd.f32 %v1507, %v1595
      %v1597 = vpop.f32.mrf.mxu0
      %v1598 = vadd.f32 %v1509, %v1597
      %1599 = vmatmul.bf16.gmra.mxu0 %v604
      %v1600 = vpop.f32.mrf.mxu0
      %v1601 = vadd.f32 %v1512, %v1600
      %v1602 = vpop.f32.mrf.mxu0
      %v1603 = vadd.f32 %v1514, %v1602
      %1604 = vmatmul.bf16.gmra.mxu0 %v611
      %v1605 = vpop.f32.mrf.mxu0
      %v1606 = vadd.f32 %v1517, %v1605
      %v1607 = vpop.f32.mrf.mxu0
      %v1608 = vadd.f32 %v1519, %v1607
      %1609 = vmatmul.bf16.gmra.mxu0 %v618
      %v1610 = vpop.f32.mrf.mxu0
      %v1611 = vadd.f32 %v1522, %v1610
      %v1612 = vpop.f32.mrf.mxu0
      %v1613 = vadd.f32 %v1524, %v1612
      %1614 = vmatmul.bf16.gmra.mxu0 %v625
      %v1615 = vpop.f32.mrf.mxu0
      %v1616 = vadd.f32 %v1527, %v1615
      %v1617 = vpop.f32.mrf.mxu0
      %v1618 = vadd.f32 %v1529, %v1617
      %1619 = vmatmul.bf16.gmra.mxu0 %v632
      %v1620 = vpop.f32.mrf.mxu0
      %v1621 = vadd.f32 %v1532, %v1620
      %v1622 = vpop.f32.mrf.mxu0
      %v1623 = vadd.f32 %v1534, %v1622
      %1624 = vmatmul.bf16.gmra.mxu0 %v639
      %v1625 = vpop.f32.mrf.mxu0
      %v1626 = vadd.f32 %v1537, %v1625
      %v1627 = vpop.f32.mrf.mxu0
      %v1628 = vadd.f32 %v1539, %v1627
      %1629 = vmatmul.bf16.gmra.mxu0 %v646
      %v1630 = vpop.f32.mrf.mxu0
      %v1631 = vadd.f32 %v1542, %v1630
      %v1632 = vpop.f32.mrf.mxu0
      %v1633 = vadd.f32 %v1544, %v1632
      %1634 = vmatmul.bf16.gmra.mxu0 %v653
      %v1635 = vpop.f32.mrf.mxu0
      %v1636 = vadd.f32 %v1547, %v1635
      %v1637 = vpop.f32.mrf.mxu0
      %v1638 = vadd.f32 %v1549, %v1637
      %1639 = vmatmul.bf16.gmra.mxu0 %v660
      %v1640 = vpop.f32.mrf.mxu0
      %v1641 = vadd.f32 %v1552, %v1640
      %v1642 = vpop.f32.mrf.mxu0
      %v1643 = vadd.f32 %v1554, %v1642
      %1644 = vmatmul.bf16.gmra.mxu0 %v667
      %v1645 = vpop.f32.mrf.mxu0
      %v1646 = vadd.f32 %v1557, %v1645
      %v1647 = vpop.f32.mrf.mxu0
      %v1648 = vadd.f32 %v1559, %v1647
      %1649 = vmatmul.bf16.gmra.mxu0 %v674
      %v1650 = vpop.f32.mrf.mxu0
      %v1651 = vadd.f32 %v1562, %v1650
      %v1652 = vpop.f32.mrf.mxu0
      %v1653 = vadd.f32 %v1564, %v1652
      %1654 = vdwg.mxu0
      %1655 = vmatpush.bf16.msra.mxu0 0
      %1656 = vmatpush.bf16.msra.mxu0 0
      %1657 = vmatpush.bf16.msra.mxu0 0
      %1658 = vmatpush.bf16.msra.mxu0 0
      %1659 = vmatpush.bf16.msra.mxu0 0
      %1660 = vmatpush.bf16.msra.mxu0 0
      %1661 = vmatpush.bf16.msra.mxu0 0
      %1662 = vmatpush.bf16.msra.mxu0 %v1022
      %1663 = vmatmul.bf16.gmra.mxu0 %v1074
      %v1664 = vpop.f32.mrf.mxu0
      %v1665 = vadd.f32 %v1576, %v1664
      %v1666 = vpop.f32.mrf.mxu0
      %v1667 = vadd.f32 %v1578, %v1666
      %1668 = vmatmul.bf16.gmra.mxu0 %v1077
      %v1669 = vpop.f32.mrf.mxu0
      %v1670 = vadd.f32 %v1581, %v1669
      %v1671 = vpop.f32.mrf.mxu0
      %v1672 = vadd.f32 %v1583, %v1671
      %1673 = vmatmul.bf16.gmra.mxu0 %v1080
      %v1674 = vpop.f32.mrf.mxu0
      %v1675 = vadd.f32 %v1586, %v1674
      %v1676 = vpop.f32.mrf.mxu0
      %v1677 = vadd.f32 %v1588, %v1676
      %1678 = vmatmul.bf16.gmra.mxu0 %v1083
      %v1679 = vpop.f32.mrf.mxu0
      %v1680 = vadd.f32 %v1591, %v1679
      %v1681 = vpop.f32.mrf.mxu0
      %v1682 = vadd.f32 %v1593, %v1681
      %1683 = vmatmul.bf16.gmra.mxu0 %v1086
      %v1684 = vpop.f32.mrf.mxu0
      %v1685 = vadd.f32 %v1596, %v1684
      %v1686 = vpop.f32.mrf.mxu0
      %v1687 = vadd.f32 %v1598, %v1686
      %1688 = vmatmul.bf16.gmra.mxu0 %v1089
      %v1689 = vpop.f32.mrf.mxu0
      %v1690 = vadd.f32 %v1601, %v1689
      %v1691 = vpop.f32.mrf.mxu0
      %v1692 = vadd.f32 %v1603, %v1691
      %1693 = vmatmul.bf16.gmra.mxu0 %v1092
      %v1694 = vpop.f32.mrf.mxu0
      %v1695 = vadd.f32 %v1606, %v1694
      %v1696 = vpop.f32.mrf.mxu0
      %v1697 = vadd.f32 %v1608, %v1696
      %1698 = vmatmul.bf16.gmra.mxu0 %v1095
      %v1699 = vpop.f32.mrf.mxu0
      %v1700 = vadd.f32 %v1611, %v1699
      %v1701 = vpop.f32.mrf.mxu0
      %v1702 = vadd.f32 %v1613, %v1701
      %1703 = vmatmul.bf16.gmra.mxu0 %v1098
      %v1704 = vpop.f32.mrf.mxu0
      %v1705 = vadd.f32 %v1616, %v1704
      %v1706 = vpop.f32.mrf.mxu0
      %v1707 = vadd.f32 %v1618, %v1706
      %1708 = vmatmul.bf16.gmra.mxu0 %v1101
      %v1709 = vpop.f32.mrf.mxu0
      %v1710 = vadd.f32 %v1621, %v1709
      %v1711 = vpop.f32.mrf.mxu0
      %v1712 = vadd.f32 %v1623, %v1711
      %1713 = vmatmul.bf16.gmra.mxu0 %v1104
      %v1714 = vpop.f32.mrf.mxu0
      %v1715 = vadd.f32 %v1626, %v1714
      %v1716 = vpop.f32.mrf.mxu0
      %v1717 = vadd.f32 %v1628, %v1716
      %1718 = vmatmul.bf16.gmra.mxu0 %v1107
      %v1719 = vpop.f32.mrf.mxu0
      %v1720 = vadd.f32 %v1631, %v1719
      %v1721 = vpop.f32.mrf.mxu0
      %v1722 = vadd.f32 %v1633, %v1721
      %1723 = vmatmul.bf16.gmra.mxu0 %v1110
      %v1724 = vpop.f32.mrf.mxu0
      %v1725 = vadd.f32 %v1636, %v1724
      %v1726 = vpop.f32.mrf.mxu0
      %v1727 = vadd.f32 %v1638, %v1726
      %1728 = vmatmul.bf16.gmra.mxu0 %v1113
      %v1729 = vpop.f32.mrf.mxu0
      %v1730 = vadd.f32 %v1641, %v1729
      %v1731 = vpop.f32.mrf.mxu0
      %v1732 = vadd.f32 %v1643, %v1731
      %1733 = vmatmul.bf16.gmra.mxu0 %v1116
      %v1734 = vpop.f32.mrf.mxu0
      %v1735 = vadd.f32 %v1646, %v1734
      %v1736 = vpop.f32.mrf.mxu0
      %v1737 = vadd.f32 %v1648, %v1736
      %1738 = vmatmul.bf16.gmra.mxu0 %v1119
      %v1739 = vpop.f32.mrf.mxu0
      %v1740 = vadd.f32 %v1651, %v1739
      %v1741 = vpop.f32.mrf.mxu0
      %v1742 = vadd.f32 %v1653, %v1741
      %1743 = vdwg.mxu0
      %v1744 = vmax.f32 %v1665, 0.0
      %v1745 = vmax.f32 %v1667, 0.0
      %v1746 = vmax.f32 %v1670, 0.0
      %v1747 = vmax.f32 %v1672, 0.0
      %v1748 = vmax.f32 %v1675, 0.0
      %v1749 = vmax.f32 %v1677, 0.0
      %v1750 = vmax.f32 %v1680, 0.0
      %v1751 = vmax.f32 %v1682, 0.0
      %v1752 = vmax.f32 %v1685, 0.0
      %v1753 = vmax.f32 %v1687, 0.0
      %v1754 = vmax.f32 %v1690, 0.0
      %v1755 = vmax.f32 %v1692, 0.0
      %v1756 = vmax.f32 %v1695, 0.0
      %v1757 = vmax.f32 %v1697, 0.0
      %v1758 = vmax.f32 %v1700, 0.0
      %v1759 = vmax.f32 %v1702, 0.0
      %v1760 = vmax.f32 %v1705, 0.0
      %v1761 = vmax.f32 %v1707, 0.0
      %v1762 = vmax.f32 %v1710, 0.0
      %v1763 = vmax.f32 %v1712, 0.0
      %v1764 = vmax.f32 %v1715, 0.0
      %v1765 = vmax.f32 %v1717, 0.0
      %v1766 = vmax.f32 %v1720, 0.0
      %v1767 = vmax.f32 %v1722, 0.0
      %v1768 = vmax.f32 %v1725, 0.0
      %v1769 = vmax.f32 %v1727, 0.0
      %v1770 = vmax.f32 %v1730, 0.0
      %v1771 = vmax.f32 %v1732, 0.0
      %v1772 = vmax.f32 %v1735, 0.0
      %v1773 = vmax.f32 %v1737, 0.0
      %v1774 = vmax.f32 %v1740, 0.0
      %v1775 = vmax.f32 %v1742, 0.0
      %v1776 = vpack.c.bf16 %v1745, %v1744
      %v1777 = vpack.c.bf16 %v1747, %v1746
      %v1778 = vpack.c.bf16 %v1749, %v1748
      %v1779 = vpack.c.bf16 %v1751, %v1750
      %v1780 = vpack.c.bf16 %v1753, %v1752
      %v1781 = vpack.c.bf16 %v1755, %v1754
      %v1782 = vpack.c.bf16 %v1757, %v1756
      %v1783 = vpack.c.bf16 %v1759, %v1758
      %v1784 = vpack.c.bf16 %v1761, %v1760
      %v1785 = vpack.c.bf16 %v1763, %v1762
      %v1786 = vpack.c.bf16 %v1765, %v1764
      %v1787 = vpack.c.bf16 %v1767, %v1766
      %v1788 = vpack.c.bf16 %v1769, %v1768
      %v1789 = vpack.c.bf16 %v1771, %v1770
      %v1790 = vpack.c.bf16 %v1773, %v1772
      %v1791 = vpack.c.bf16 %v1775, %v1774
      %v1792 = vld [vmem:[%s3] sm:$0xf]
      %v1793 = vld [vmem:[%s3 + $0x4] sm:$0xf]
      %v1794 = vld [vmem:[%s3 + $0x8] sm:$0xf]
      %v1795 = vld [vmem:[%s3 + $0xc] sm:$0xf]
      %v1796 = vld [vmem:[%s3 + $0x10] sm:$0xf]
      %v1797 = vld [vmem:[%s3 + $0x14] sm:$0xf]
      %v1798 = vld [vmem:[%s3 + $0x18] sm:$0xf]
      %v1799 = vld [vmem:[%s3 + $0x1c] sm:$0xf]
      %v1800 = vld [vmem:[%s3 + $0x20] sm:$0xf]
      %v1801 = vld [vmem:[%s3 + $0x24] sm:$0xf]
      %v1802 = vld [vmem:[%s3 + $0x28] sm:$0xf]
      %v1803 = vld [vmem:[%s3 + $0x2c] sm:$0xf]
      %v1804 = vld [vmem:[%s3 + $0x30] sm:$0xf]
      %v1805 = vld [vmem:[%s3 + $0x34] sm:$0xf]
      %v1806 = vld [vmem:[%s3 + $0x38] sm:$0xf]
      %v1807 = vld [vmem:[%s3 + $0x3c] sm:$0xf]
      %v1808 = vld [vmem:[%s4] sm:$0x1]
      %v1810 = vperm.slane %v1808, 0
      %v1828 = vunpack.c.l.b16 %v1792
      %v1829 = vunpack.c.l.b16 %v1793
      %v1830 = vunpack.c.l.b16 %v1794
      %v1831 = vunpack.c.l.b16 %v1795
      %v1832 = vunpack.c.l.b16 %v1796
      %v1833 = vunpack.c.l.b16 %v1797
      %v1834 = vunpack.c.l.b16 %v1798
      %v1835 = vunpack.c.l.b16 %v1799
      %v1836 = vunpack.c.l.b16 %v1800
      %v1837 = vunpack.c.l.b16 %v1801
      %v1838 = vunpack.c.l.b16 %v1802
      %v1839 = vunpack.c.l.b16 %v1803
      %v1840 = vunpack.c.l.b16 %v1804
      %v1841 = vunpack.c.l.b16 %v1805
      %v1842 = vunpack.c.l.b16 %v1806
      %v1843 = vunpack.c.l.b16 %v1807
      %v1844 = vpack.c.b16 %v1829, %v1828
      %v1845 = vpack.c.b16 %v1831, %v1830
      %v1846 = vpack.c.b16 %v1833, %v1832
      %v1847 = vpack.c.b16 %v1835, %v1834
      %v1848 = vpack.c.b16 %v1837, %v1836
      %v1849 = vpack.c.b16 %v1839, %v1838
      %v1850 = vpack.c.b16 %v1841, %v1840
      %v1851 = vpack.c.b16 %v1843, %v1842
      %1860 = vmatpush.bf16.msra.mxu0 %v1851
      %1861 = vmatpush.bf16.msra.mxu0 %v1850
      %1862 = vmatpush.bf16.msra.mxu0 %v1849
      %1863 = vmatpush.bf16.msra.mxu0 %v1848
      %1864 = vmatpush.bf16.msra.mxu0 %v1847
      %1865 = vmatpush.bf16.msra.mxu0 %v1846
      %1866 = vmatpush.bf16.msra.mxu0 %v1845
      %1867 = vmatpush.bf16.msra.mxu0 %v1844
      %1868 = vmatmul.bf16.gmra.mxu0 %v1776
      %v1869 = vpop.f32.mrf.mxu0
      %v1870 = vadd.f32 %v1810, %v1869
      %v1871 = vpop.f32.mrf.mxu0
      %v1872 = vadd.f32 %v1810, %v1871
      %1873 = vmatmul.bf16.gmra.mxu0 %v1777
      %v1874 = vpop.f32.mrf.mxu0
      %v1875 = vadd.f32 %v1810, %v1874
      %v1876 = vpop.f32.mrf.mxu0
      %v1877 = vadd.f32 %v1810, %v1876
      %1878 = vmatmul.bf16.gmra.mxu0 %v1778
      %v1879 = vpop.f32.mrf.mxu0
      %v1880 = vadd.f32 %v1810, %v1879
      %v1881 = vpop.f32.mrf.mxu0
      %v1882 = vadd.f32 %v1810, %v1881
      %1883 = vmatmul.bf16.gmra.mxu0 %v1779
      %v1884 = vpop.f32.mrf.mxu0
      %v1885 = vadd.f32 %v1810, %v1884
      %v1886 = vpop.f32.mrf.mxu0
      %v1887 = vadd.f32 %v1810, %v1886
      %1888 = vmatmul.bf16.gmra.mxu0 %v1780
      %v1889 = vpop.f32.mrf.mxu0
      %v1890 = vadd.f32 %v1810, %v1889
      %v1891 = vpop.f32.mrf.mxu0
      %v1892 = vadd.f32 %v1810, %v1891
      %1893 = vmatmul.bf16.gmra.mxu0 %v1781
      %v1894 = vpop.f32.mrf.mxu0
      %v1895 = vadd.f32 %v1810, %v1894
      %v1896 = vpop.f32.mrf.mxu0
      %v1897 = vadd.f32 %v1810, %v1896
      %1898 = vmatmul.bf16.gmra.mxu0 %v1782
      %v1899 = vpop.f32.mrf.mxu0
      %v1900 = vadd.f32 %v1810, %v1899
      %v1901 = vpop.f32.mrf.mxu0
      %v1902 = vadd.f32 %v1810, %v1901
      %1903 = vmatmul.bf16.gmra.mxu0 %v1783
      %v1904 = vpop.f32.mrf.mxu0
      %v1905 = vadd.f32 %v1810, %v1904
      %v1906 = vpop.f32.mrf.mxu0
      %v1907 = vadd.f32 %v1810, %v1906
      %1908 = vmatmul.bf16.gmra.mxu0 %v1784
      %v1909 = vpop.f32.mrf.mxu0
      %v1910 = vadd.f32 %v1810, %v1909
      %v1911 = vpop.f32.mrf.mxu0
      %v1912 = vadd.f32 %v1810, %v1911
      %1913 = vmatmul.bf16.gmra.mxu0 %v1785
      %v1914 = vpop.f32.mrf.mxu0
      %v1915 = vadd.f32 %v1810, %v1914
      %v1916 = vpop.f32.mrf.mxu0
      %v1917 = vadd.f32 %v1810, %v1916
      %1918 = vmatmul.bf16.gmra.mxu0 %v1786
      %v1919 = vpop.f32.mrf.mxu0
      %v1920 = vadd.f32 %v1810, %v1919
      %v1921 = vpop.f32.mrf.mxu0
      %v1922 = vadd.f32 %v1810, %v1921
      %1923 = vmatmul.bf16.gmra.mxu0 %v1787
      %v1924 = vpop.f32.mrf.mxu0
      %v1925 = vadd.f32 %v1810, %v1924
      %v1926 = vpop.f32.mrf.mxu0
      %v1927 = vadd.f32 %v1810, %v1926
      %1928 = vmatmul.bf16.gmra.mxu0 %v1788
      %v1929 = vpop.f32.mrf.mxu0
      %v1930 = vadd.f32 %v1810, %v1929
      %v1931 = vpop.f32.mrf.mxu0
      %v1932 = vadd.f32 %v1810, %v1931
      %1933 = vmatmul.bf16.gmra.mxu0 %v1789
      %v1934 = vpop.f32.mrf.mxu0
      %v1935 = vadd.f32 %v1810, %v1934
      %v1936 = vpop.f32.mrf.mxu0
      %v1937 = vadd.f32 %v1810, %v1936
      %1938 = vmatmul.bf16.gmra.mxu0 %v1790
      %v1939 = vpop.f32.mrf.mxu0
      %v1940 = vadd.f32 %v1810, %v1939
      %v1941 = vpop.f32.mrf.mxu0
      %v1942 = vadd.f32 %v1810, %v1941
      %1943 = vmatmul.bf16.gmra.mxu0 %v1791
      %v1944 = vpop.f32.mrf.mxu0
      %v1945 = vadd.f32 %v1810, %v1944
      %v1946 = vpop.f32.mrf.mxu0
      %v1947 = vadd.f32 %v1810, %v1946
      %1948 = vdwg.mxu0
      %v1949 = vmax.f32 %v1870, 0.0
      %v1950 = vmax.f32 %v1872, 0.0
      %v1951 = vmax.f32 %v1875, 0.0
      %v1952 = vmax.f32 %v1877, 0.0
      %v1953 = vmax.f32 %v1880, 0.0
      %v1954 = vmax.f32 %v1882, 0.0
      %v1955 = vmax.f32 %v1885, 0.0
      %v1956 = vmax.f32 %v1887, 0.0
      %v1957 = vmax.f32 %v1890, 0.0
      %v1958 = vmax.f32 %v1892, 0.0
      %v1959 = vmax.f32 %v1895, 0.0
      %v1960 = vmax.f32 %v1897, 0.0
      %v1961 = vmax.f32 %v1900, 0.0
      %v1962 = vmax.f32 %v1902, 0.0
      %v1963 = vmax.f32 %v1905, 0.0
      %v1964 = vmax.f32 %v1907, 0.0
      %v1965 = vmax.f32 %v1910, 0.0
      %v1966 = vmax.f32 %v1912, 0.0
      %v1967 = vmax.f32 %v1915, 0.0
      %v1968 = vmax.f32 %v1917, 0.0
      %v1969 = vmax.f32 %v1920, 0.0
      %v1970 = vmax.f32 %v1922, 0.0
      %v1971 = vmax.f32 %v1925, 0.0
      %v1972 = vmax.f32 %v1927, 0.0
      %v1973 = vmax.f32 %v1930, 0.0
      %v1974 = vmax.f32 %v1932, 0.0
      %v1975 = vmax.f32 %v1935, 0.0
      %v1976 = vmax.f32 %v1937, 0.0
      %v1977 = vmax.f32 %v1940, 0.0
      %v1978 = vmax.f32 %v1942, 0.0
      %v1979 = vmax.f32 %v1945, 0.0
      %v1980 = vmax.f32 %v1947, 0.0
      %v1981 = vpack.c.bf16 %v1950, %v1949
      %v1982 = vpack.c.bf16 %v1952, %v1951
      %v1983 = vpack.c.bf16 %v1954, %v1953
      %v1984 = vpack.c.bf16 %v1956, %v1955
      %v1985 = vpack.c.bf16 %v1958, %v1957
      %v1986 = vpack.c.bf16 %v1960, %v1959
      %v1987 = vpack.c.bf16 %v1962, %v1961
      %v1988 = vpack.c.bf16 %v1964, %v1963
      %v1989 = vpack.c.bf16 %v1966, %v1965
      %v1990 = vpack.c.bf16 %v1968, %v1967
      %v1991 = vpack.c.bf16 %v1970, %v1969
      %v1992 = vpack.c.bf16 %v1972, %v1971
      %v1993 = vpack.c.bf16 %v1974, %v1973
      %v1994 = vpack.c.bf16 %v1976, %v1975
      %v1995 = vpack.c.bf16 %v1978, %v1977
      %v1996 = vpack.c.bf16 %v1980, %v1979
      %v1997 = vld [vmem:[%s5] sm:$0xf]
      %v1998 = vld [vmem:[%s5 + $0x4] sm:$0xf]
      %v1999 = vld [vmem:[%s5 + $0x8] sm:$0xf]
      %v2000 = vld [vmem:[%s5 + $0xc] sm:$0xf]
      %v2001 = vld [vmem:[%s5 + $0x10] sm:$0xf]
      %v2002 = vld [vmem:[%s5 + $0x14] sm:$0xf]
      %v2003 = vld [vmem:[%s5 + $0x18] sm:$0xf]
      %v2004 = vld [vmem:[%s5 + $0x1c] sm:$0xf]
      %v2005 = vld [vmem:[%s5 + $0x20] sm:$0xf]
      %v2006 = vld [vmem:[%s5 + $0x24] sm:$0xf]
      %v2007 = vld [vmem:[%s5 + $0x28] sm:$0xf]
      %v2008 = vld [vmem:[%s5 + $0x2c] sm:$0xf]
      %v2009 = vld [vmem:[%s5 + $0x30] sm:$0xf]
      %v2010 = vld [vmem:[%s5 + $0x34] sm:$0xf]
      %v2011 = vld [vmem:[%s5 + $0x38] sm:$0xf]
      %v2012 = vld [vmem:[%s5 + $0x3c] sm:$0xf]
      %v2013 = vld [vmem:[%s6] sm:$0x1]
      %v2015 = vperm.slane %v2013, 0
      %v2033 = vunpack.c.l.b16 %v1997
      %v2034 = vunpack.c.l.b16 %v1998
      %v2035 = vunpack.c.l.b16 %v1999
      %v2036 = vunpack.c.l.b16 %v2000
      %v2037 = vunpack.c.l.b16 %v2001
      %v2038 = vunpack.c.l.b16 %v2002
      %v2039 = vunpack.c.l.b16 %v2003
      %v2040 = vunpack.c.l.b16 %v2004
      %v2041 = vunpack.c.l.b16 %v2005
      %v2042 = vunpack.c.l.b16 %v2006
      %v2043 = vunpack.c.l.b16 %v2007
      %v2044 = vunpack.c.l.b16 %v2008
      %v2045 = vunpack.c.l.b16 %v2009
      %v2046 = vunpack.c.l.b16 %v2010
      %v2047 = vunpack.c.l.b16 %v2011
      %v2048 = vunpack.c.l.b16 %v2012
      %v2049 = vpack.c.b16 %v2034, %v2033
      %v2050 = vpack.c.b16 %v2036, %v2035
      %v2051 = vpack.c.b16 %v2038, %v2037
      %v2052 = vpack.c.b16 %v2040, %v2039
      %v2053 = vpack.c.b16 %v2042, %v2041
      %v2054 = vpack.c.b16 %v2044, %v2043
      %v2055 = vpack.c.b16 %v2046, %v2045
      %v2056 = vpack.c.b16 %v2048, %v2047
      %2065 = vmatpush.bf16.msra.mxu0 %v2056
      %2066 = vmatpush.bf16.msra.mxu0 %v2055
      %2067 = vmatpush.bf16.msra.mxu0 %v2054
      %2068 = vmatpush.bf16.msra.mxu0 %v2053
      %2069 = vmatpush.bf16.msra.mxu0 %v2052
      %2070 = vmatpush.bf16.msra.mxu0 %v2051
      %2071 = vmatpush.bf16.msra.mxu0 %v2050
      %2072 = vmatpush.bf16.msra.mxu0 %v2049
      %2073 = vmatmul.bf16.gmra.mxu0 %v1981
      %v2074 = vpop.f32.mrf.mxu0
      %v2075 = vadd.f32 %v2015, %v2074
      %v2076 = vpop.f32.mrf.mxu0
      %v2077 = vadd.f32 %v2015, %v2076
      %2078 = vmatmul.bf16.gmra.mxu0 %v1982
      %v2079 = vpop.f32.mrf.mxu0
      %v2080 = vadd.f32 %v2015, %v2079
      %v2081 = vpop.f32.mrf.mxu0
      %v2082 = vadd.f32 %v2015, %v2081
      %2083 = vmatmul.bf16.gmra.mxu0 %v1983
      %v2084 = vpop.f32.mrf.mxu0
      %v2085 = vadd.f32 %v2015, %v2084
      %v2086 = vpop.f32.mrf.mxu0
      %v2087 = vadd.f32 %v2015, %v2086
      %2088 = vmatmul.bf16.gmra.mxu0 %v1984
      %v2089 = vpop.f32.mrf.mxu0
      %v2090 = vadd.f32 %v2015, %v2089
      %v2091 = vpop.f32.mrf.mxu0
      %v2092 = vadd.f32 %v2015, %v2091
      %2093 = vmatmul.bf16.gmra.mxu0 %v1985
      %v2094 = vpop.f32.mrf.mxu0
      %v2095 = vadd.f32 %v2015, %v2094
      %v2096 = vpop.f32.mrf.mxu0
      %v2097 = vadd.f32 %v2015, %v2096
      %2098 = vmatmul.bf16.gmra.mxu0 %v1986
      %v2099 = vpop.f32.mrf.mxu0
      %v2100 = vadd.f32 %v2015, %v2099
      %v2101 = vpop.f32.mrf.mxu0
      %v2102 = vadd.f32 %v2015, %v2101
      %2103 = vmatmul.bf16.gmra.mxu0 %v1987
      %v2104 = vpop.f32.mrf.mxu0
      %v2105 = vadd.f32 %v2015, %v2104
      %v2106 = vpop.f32.mrf.mxu0
      %v2107 = vadd.f32 %v2015, %v2106
      %2108 = vmatmul.bf16.gmra.mxu0 %v1988
      %v2109 = vpop.f32.mrf.mxu0
      %v2110 = vadd.f32 %v2015, %v2109
      %v2111 = vpop.f32.mrf.mxu0
      %v2112 = vadd.f32 %v2015, %v2111
      %2113 = vmatmul.bf16.gmra.mxu0 %v1989
      %v2114 = vpop.f32.mrf.mxu0
      %v2115 = vadd.f32 %v2015, %v2114
      %v2116 = vpop.f32.mrf.mxu0
      %v2117 = vadd.f32 %v2015, %v2116
      %2118 = vmatmul.bf16.gmra.mxu0 %v1990
      %v2119 = vpop.f32.mrf.mxu0
      %v2120 = vadd.f32 %v2015, %v2119
      %v2121 = vpop.f32.mrf.mxu0
      %v2122 = vadd.f32 %v2015, %v2121
      %2123 = vmatmul.bf16.gmra.mxu0 %v1991
      %v2124 = vpop.f32.mrf.mxu0
      %v2125 = vadd.f32 %v2015, %v2124
      %v2126 = vpop.f32.mrf.mxu0
      %v2127 = vadd.f32 %v2015, %v2126
      %2128 = vmatmul.bf16.gmra.mxu0 %v1992
      %v2129 = vpop.f32.mrf.mxu0
      %v2130 = vadd.f32 %v2015, %v2129
      %v2131 = vpop.f32.mrf.mxu0
      %v2132 = vadd.f32 %v2015, %v2131
      %2133 = vmatmul.bf16.gmra.mxu0 %v1993
      %v2134 = vpop.f32.mrf.mxu0
      %v2135 = vadd.f32 %v2015, %v2134
      %v2136 = vpop.f32.mrf.mxu0
      %v2137 = vadd.f32 %v2015, %v2136
      %2138 = vmatmul.bf16.gmra.mxu0 %v1994
      %v2139 = vpop.f32.mrf.mxu0
      %v2140 = vadd.f32 %v2015, %v2139
      %v2141 = vpop.f32.mrf.mxu0
      %v2142 = vadd.f32 %v2015, %v2141
      %2143 = vmatmul.bf16.gmra.mxu0 %v1995
      %v2144 = vpop.f32.mrf.mxu0
      %v2145 = vadd.f32 %v2015, %v2144
      %v2146 = vpop.f32.mrf.mxu0
      %v2147 = vadd.f32 %v2015, %v2146
      %2148 = vmatmul.bf16.gmra.mxu0 %v1996
      %v2149 = vpop.f32.mrf.mxu0
      %v2150 = vadd.f32 %v2015, %v2149
      %v2151 = vpop.f32.mrf.mxu0
      %v2152 = vadd.f32 %v2015, %v2151
      %2153 = vdwg.mxu0
      %v2154 = vmax.f32 %v2075, 0.0
      %v2155 = vmax.f32 %v2077, 0.0
      %v2156 = vmax.f32 %v2080, 0.0
      %v2157 = vmax.f32 %v2082, 0.0
      %v2158 = vmax.f32 %v2085, 0.0
      %v2159 = vmax.f32 %v2087, 0.0
      %v2160 = vmax.f32 %v2090, 0.0
      %v2161 = vmax.f32 %v2092, 0.0
      %v2162 = vmax.f32 %v2095, 0.0
      %v2163 = vmax.f32 %v2097, 0.0
      %v2164 = vmax.f32 %v2100, 0.0
      %v2165 = vmax.f32 %v2102, 0.0
      %v2166 = vmax.f32 %v2105, 0.0
      %v2167 = vmax.f32 %v2107, 0.0
      %v2168 = vmax.f32 %v2110, 0.0
      %v2169 = vmax.f32 %v2112, 0.0
      %v2170 = vmax.f32 %v2115, 0.0
      %v2171 = vmax.f32 %v2117, 0.0
      %v2172 = vmax.f32 %v2120, 0.0
      %v2173 = vmax.f32 %v2122, 0.0
      %v2174 = vmax.f32 %v2125, 0.0
      %v2175 = vmax.f32 %v2127, 0.0
      %v2176 = vmax.f32 %v2130, 0.0
      %v2177 = vmax.f32 %v2132, 0.0
      %v2178 = vmax.f32 %v2135, 0.0
      %v2179 = vmax.f32 %v2137, 0.0
      %v2180 = vmax.f32 %v2140, 0.0
      %v2181 = vmax.f32 %v2142, 0.0
      %v2182 = vmax.f32 %v2145, 0.0
      %v2183 = vmax.f32 %v2147, 0.0
      %v2184 = vmax.f32 %v2150, 0.0
      %v2185 = vmax.f32 %v2152, 0.0
      %v2186 = vpack.c.bf16 %v2155, %v2154
      %v2187 = vpack.c.bf16 %v2157, %v2156
      %v2188 = vpack.c.bf16 %v2159, %v2158
      %v2189 = vpack.c.bf16 %v2161, %v2160
      %v2190 = vpack.c.bf16 %v2163, %v2162
      %v2191 = vpack.c.bf16 %v2165, %v2164
      %v2192 = vpack.c.bf16 %v2167, %v2166
      %v2193 = vpack.c.bf16 %v2169, %v2168
      %v2194 = vpack.c.bf16 %v2171, %v2170
      %v2195 = vpack.c.bf16 %v2173, %v2172
      %v2196 = vpack.c.bf16 %v2175, %v2174
      %v2197 = vpack.c.bf16 %v2177, %v2176
      %v2198 = vpack.c.bf16 %v2179, %v2178
      %v2199 = vpack.c.bf16 %v2181, %v2180
      %v2200 = vpack.c.bf16 %v2183, %v2182
      %v2201 = vpack.c.bf16 %v2185, %v2184
      %v2202 = vld [vmem:[%s7] sm:$0xf]
      %v2203 = vld [vmem:[%s7 + $0x4] sm:$0xf]
      %v2204 = vld [vmem:[%s7 + $0x8] sm:$0xf]
      %v2205 = vld [vmem:[%s7 + $0xc] sm:$0xf]
      %v2206 = vld [vmem:[%s7 + $0x10] sm:$0xf]
      %v2207 = vld [vmem:[%s7 + $0x14] sm:$0xf]
      %v2208 = vld [vmem:[%s7 + $0x18] sm:$0xf]
      %v2209 = vld [vmem:[%s7 + $0x1c] sm:$0xf]
      %v2210 = vld [vmem:[%s7 + $0x20] sm:$0xf]
      %v2211 = vld [vmem:[%s7 + $0x24] sm:$0xf]
      %v2212 = vld [vmem:[%s7 + $0x28] sm:$0xf]
      %v2213 = vld [vmem:[%s7 + $0x2c] sm:$0xf]
      %v2214 = vld [vmem:[%s7 + $0x30] sm:$0xf]
      %v2215 = vld [vmem:[%s7 + $0x34] sm:$0xf]
      %v2216 = vld [vmem:[%s7 + $0x38] sm:$0xf]
      %v2217 = vld [vmem:[%s7 + $0x3c] sm:$0xf]
      %v2218 = vld [vmem:[%s8] sm:$0x1]
      %v2220 = vperm.slane %v2218, 0
      %v2238 = vunpack.c.l.b16 %v2202
      %v2239 = vunpack.c.l.b16 %v2203
      %v2240 = vunpack.c.l.b16 %v2204
      %v2241 = vunpack.c.l.b16 %v2205
      %v2242 = vunpack.c.l.b16 %v2206
      %v2243 = vunpack.c.l.b16 %v2207
      %v2244 = vunpack.c.l.b16 %v2208
      %v2245 = vunpack.c.l.b16 %v2209
      %v2246 = vunpack.c.l.b16 %v2210
      %v2247 = vunpack.c.l.b16 %v2211
      %v2248 = vunpack.c.l.b16 %v2212
      %v2249 = vunpack.c.l.b16 %v2213
      %v2250 = vunpack.c.l.b16 %v2214
      %v2251 = vunpack.c.l.b16 %v2215
      %v2252 = vunpack.c.l.b16 %v2216
      %v2253 = vunpack.c.l.b16 %v2217
      %v2254 = vpack.c.b16 %v2239, %v2238
      %v2255 = vpack.c.b16 %v2241, %v2240
      %v2256 = vpack.c.b16 %v2243, %v2242
      %v2257 = vpack.c.b16 %v2245, %v2244
      %v2258 = vpack.c.b16 %v2247, %v2246
      %v2259 = vpack.c.b16 %v2249, %v2248
      %v2260 = vpack.c.b16 %v2251, %v2250
      %v2261 = vpack.c.b16 %v2253, %v2252
      %2270 = vmatpush.bf16.msra.mxu0 %v2261
      %2271 = vmatpush.bf16.msra.mxu0 %v2260
      %2272 = vmatpush.bf16.msra.mxu0 %v2259
      %2273 = vmatpush.bf16.msra.mxu0 %v2258
      %2274 = vmatpush.bf16.msra.mxu0 %v2257
      %2275 = vmatpush.bf16.msra.mxu0 %v2256
      %2276 = vmatpush.bf16.msra.mxu0 %v2255
      %2277 = vmatpush.bf16.msra.mxu0 %v2254
      %2278 = vmatmul.bf16.gmra.mxu0 %v2186
      %v2279 = vpop.f32.mrf.mxu0
      %v2280 = vadd.f32 %v2220, %v2279
      %v2281 = vpop.f32.mrf.mxu0
      %v2282 = vadd.f32 %v2220, %v2281
      %2283 = vmatmul.bf16.gmra.mxu0 %v2187
      %v2284 = vpop.f32.mrf.mxu0
      %v2285 = vadd.f32 %v2220, %v2284
      %v2286 = vpop.f32.mrf.mxu0
      %v2287 = vadd.f32 %v2220, %v2286
      %2288 = vmatmul.bf16.gmra.mxu0 %v2188
      %v2289 = vpop.f32.mrf.mxu0
      %v2290 = vadd.f32 %v2220, %v2289
      %v2291 = vpop.f32.mrf.mxu0
      %v2292 = vadd.f32 %v2220, %v2291
      %2293 = vmatmul.bf16.gmra.mxu0 %v2189
      %v2294 = vpop.f32.mrf.mxu0
      %v2295 = vadd.f32 %v2220, %v2294
      %v2296 = vpop.f32.mrf.mxu0
      %v2297 = vadd.f32 %v2220, %v2296
      %2298 = vmatmul.bf16.gmra.mxu0 %v2190
      %v2299 = vpop.f32.mrf.mxu0
      %v2300 = vadd.f32 %v2220, %v2299
      %v2301 = vpop.f32.mrf.mxu0
      %v2302 = vadd.f32 %v2220, %v2301
      %2303 = vmatmul.bf16.gmra.mxu0 %v2191
      %v2304 = vpop.f32.mrf.mxu0
      %v2305 = vadd.f32 %v2220, %v2304
      %v2306 = vpop.f32.mrf.mxu0
      %v2307 = vadd.f32 %v2220, %v2306
      %2308 = vmatmul.bf16.gmra.mxu0 %v2192
      %v2309 = vpop.f32.mrf.mxu0
      %v2310 = vadd.f32 %v2220, %v2309
      %v2311 = vpop.f32.mrf.mxu0
      %v2312 = vadd.f32 %v2220, %v2311
      %2313 = vmatmul.bf16.gmra.mxu0 %v2193
      %v2314 = vpop.f32.mrf.mxu0
      %v2315 = vadd.f32 %v2220, %v2314
      %v2316 = vpop.f32.mrf.mxu0
      %v2317 = vadd.f32 %v2220, %v2316
      %2318 = vmatmul.bf16.gmra.mxu0 %v2194
      %v2319 = vpop.f32.mrf.mxu0
      %v2320 = vadd.f32 %v2220, %v2319
      %v2321 = vpop.f32.mrf.mxu0
      %v2322 = vadd.f32 %v2220, %v2321
      %2323 = vmatmul.bf16.gmra.mxu0 %v2195
      %v2324 = vpop.f32.mrf.mxu0
      %v2325 = vadd.f32 %v2220, %v2324
      %v2326 = vpop.f32.mrf.mxu0
      %v2327 = vadd.f32 %v2220, %v2326
      %2328 = vmatmul.bf16.gmra.mxu0 %v2196
      %v2329 = vpop.f32.mrf.mxu0
      %v2330 = vadd.f32 %v2220, %v2329
      %v2331 = vpop.f32.mrf.mxu0
      %v2332 = vadd.f32 %v2220, %v2331
      %2333 = vmatmul.bf16.gmra.mxu0 %v2197
      %v2334 = vpop.f32.mrf.mxu0
      %v2335 = vadd.f32 %v2220, %v2334
      %v2336 = vpop.f32.mrf.mxu0
      %v2337 = vadd.f32 %v2220, %v2336
      %2338 = vmatmul.bf16.gmra.mxu0 %v2198
      %v2339 = vpop.f32.mrf.mxu0
      %v2340 = vadd.f32 %v2220, %v2339
      %v2341 = vpop.f32.mrf.mxu0
      %v2342 = vadd.f32 %v2220, %v2341
      %2343 = vmatmul.bf16.gmra.mxu0 %v2199
      %v2344 = vpop.f32.mrf.mxu0
      %v2345 = vadd.f32 %v2220, %v2344
      %v2346 = vpop.f32.mrf.mxu0
      %v2347 = vadd.f32 %v2220, %v2346
      %2348 = vmatmul.bf16.gmra.mxu0 %v2200
      %v2349 = vpop.f32.mrf.mxu0
      %v2350 = vadd.f32 %v2220, %v2349
      %v2351 = vpop.f32.mrf.mxu0
      %v2352 = vadd.f32 %v2220, %v2351
      %2353 = vmatmul.bf16.gmra.mxu0 %v2201
      %v2354 = vpop.f32.mrf.mxu0
      %v2355 = vadd.f32 %v2220, %v2354
      %v2356 = vpop.f32.mrf.mxu0
      %v2357 = vadd.f32 %v2220, %v2356
      %2358 = vdwg.mxu0
      %vm2359 = vcmask 80896
      %v2360 = vsel %vm2359, %v2280, -inf
      %2361 = vmax.xlane.f32.xlu0 %v2360
      %v2362 = vpop.xlane.xlu0 %2361
      %v2363 = vsel %vm2359, %v2282, -inf
      %2364 = vmax.xlane.f32.xlu0 %v2363
      %v2365 = vpop.xlane.xlu0 %2364
      %v2366 = vsel %vm2359, %v2285, -inf
      %2367 = vmax.xlane.f32.xlu0 %v2366
      %v2368 = vpop.xlane.xlu0 %2367
      %v2369 = vsel %vm2359, %v2287, -inf
      %2370 = vmax.xlane.f32.xlu0 %v2369
      %v2371 = vpop.xlane.xlu0 %2370
      %v2372 = vsel %vm2359, %v2290, -inf
      %2373 = vmax.xlane.f32.xlu0 %v2372
      %v2374 = vpop.xlane.xlu0 %2373
      %v2375 = vsel %vm2359, %v2292, -inf
      %2376 = vmax.xlane.f32.xlu0 %v2375
      %v2377 = vpop.xlane.xlu0 %2376
      %v2378 = vsel %vm2359, %v2295, -inf
      %2379 = vmax.xlane.f32.xlu0 %v2378
      %v2380 = vpop.xlane.xlu0 %2379
      %v2381 = vsel %vm2359, %v2297, -inf
      %2382 = vmax.xlane.f32.xlu0 %v2381
      %v2383 = vpop.xlane.xlu0 %2382
      %v2384 = vsel %vm2359, %v2300, -inf
      %2385 = vmax.xlane.f32.xlu0 %v2384
      %v2386 = vpop.xlane.xlu0 %2385
      %v2387 = vsel %vm2359, %v2302, -inf
      %2388 = vmax.xlane.f32.xlu0 %v2387
      %v2389 = vpop.xlane.xlu0 %2388
      %v2390 = vsel %vm2359, %v2305, -inf
      %2391 = vmax.xlane.f32.xlu0 %v2390
      %v2392 = vpop.xlane.xlu0 %2391
      %v2393 = vsel %vm2359, %v2307, -inf
      %2394 = vmax.xlane.f32.xlu0 %v2393
      %v2395 = vpop.xlane.xlu0 %2394
      %v2396 = vsel %vm2359, %v2310, -inf
      %2397 = vmax.xlane.f32.xlu0 %v2396
      %v2398 = vpop.xlane.xlu0 %2397
      %v2399 = vsel %vm2359, %v2312, -inf
      %2400 = vmax.xlane.f32.xlu0 %v2399
      %v2401 = vpop.xlane.xlu0 %2400
      %v2402 = vsel %vm2359, %v2315, -inf
      %2403 = vmax.xlane.f32.xlu0 %v2402
      %v2404 = vpop.xlane.xlu0 %2403
      %v2405 = vsel %vm2359, %v2317, -inf
      %2406 = vmax.xlane.f32.xlu0 %v2405
      %v2407 = vpop.xlane.xlu0 %2406
      %v2408 = vsel %vm2359, %v2320, -inf
      %2409 = vmax.xlane.f32.xlu0 %v2408
      %v2410 = vpop.xlane.xlu0 %2409
      %v2411 = vsel %vm2359, %v2322, -inf
      %2412 = vmax.xlane.f32.xlu0 %v2411
      %v2413 = vpop.xlane.xlu0 %2412
      %v2414 = vsel %vm2359, %v2325, -inf
      %2415 = vmax.xlane.f32.xlu0 %v2414
      %v2416 = vpop.xlane.xlu0 %2415
      %v2417 = vsel %vm2359, %v2327, -inf
      %2418 = vmax.xlane.f32.xlu0 %v2417
      %v2419 = vpop.xlane.xlu0 %2418
      %v2420 = vsel %vm2359, %v2330, -inf
      %2421 = vmax.xlane.f32.xlu0 %v2420
      %v2422 = vpop.xlane.xlu0 %2421
      %v2423 = vsel %vm2359, %v2332, -inf
      %2424 = vmax.xlane.f32.xlu0 %v2423
      %v2425 = vpop.xlane.xlu0 %2424
      %v2426 = vsel %vm2359, %v2335, -inf
      %2427 = vmax.xlane.f32.xlu0 %v2426
      %v2428 = vpop.xlane.xlu0 %2427
      %v2429 = vsel %vm2359, %v2337, -inf
      %2430 = vmax.xlane.f32.xlu0 %v2429
      %v2431 = vpop.xlane.xlu0 %2430
      %v2432 = vsel %vm2359, %v2340, -inf
      %2433 = vmax.xlane.f32.xlu0 %v2432
      %v2434 = vpop.xlane.xlu0 %2433
      %v2435 = vsel %vm2359, %v2342, -inf
      %2436 = vmax.xlane.f32.xlu0 %v2435
      %v2437 = vpop.xlane.xlu0 %2436
      %v2438 = vsel %vm2359, %v2345, -inf
      %2439 = vmax.xlane.f32.xlu0 %v2438
      %v2440 = vpop.xlane.xlu0 %2439
      %v2441 = vsel %vm2359, %v2347, -inf
      %2442 = vmax.xlane.f32.xlu0 %v2441
      %v2443 = vpop.xlane.xlu0 %2442
      %v2444 = vsel %vm2359, %v2350, -inf
      %2445 = vmax.xlane.f32.xlu0 %v2444
      %v2446 = vpop.xlane.xlu0 %2445
      %v2447 = vsel %vm2359, %v2352, -inf
      %2448 = vmax.xlane.f32.xlu0 %v2447
      %v2449 = vpop.xlane.xlu0 %2448
      %v2450 = vsel %vm2359, %v2355, -inf
      %2451 = vmax.xlane.f32.xlu0 %v2450
      %v2452 = vpop.xlane.xlu0 %2451
      %v2453 = vsel %vm2359, %v2357, -inf
      %2454 = vmax.xlane.f32.xlu0 %v2453
      %v2455 = vpop.xlane.xlu0 %2454
      %v2456 = vsub.f32 %v2280, %v2362
      %v2457 = vsub.f32 %v2282, %v2365
      %v2458 = vsub.f32 %v2285, %v2368
      %v2459 = vsub.f32 %v2287, %v2371
      %v2460 = vsub.f32 %v2290, %v2374
      %v2461 = vsub.f32 %v2292, %v2377
      %v2462 = vsub.f32 %v2295, %v2380
      %v2463 = vsub.f32 %v2297, %v2383
      %v2464 = vsub.f32 %v2300, %v2386
      %v2465 = vsub.f32 %v2302, %v2389
      %v2466 = vsub.f32 %v2305, %v2392
      %v2467 = vsub.f32 %v2307, %v2395
      %v2468 = vsub.f32 %v2310, %v2398
      %v2469 = vsub.f32 %v2312, %v2401
      %v2470 = vsub.f32 %v2315, %v2404
      %v2471 = vsub.f32 %v2317, %v2407
      %v2472 = vsub.f32 %v2320, %v2410
      %v2473 = vsub.f32 %v2322, %v2413
      %v2474 = vsub.f32 %v2325, %v2416
      %v2475 = vsub.f32 %v2327, %v2419
      %v2476 = vsub.f32 %v2330, %v2422
      %v2477 = vsub.f32 %v2332, %v2425
      %v2478 = vsub.f32 %v2335, %v2428
      %v2479 = vsub.f32 %v2337, %v2431
      %v2480 = vsub.f32 %v2340, %v2434
      %v2481 = vsub.f32 %v2342, %v2437
      %v2482 = vsub.f32 %v2345, %v2440
      %v2483 = vsub.f32 %v2347, %v2443
      %v2484 = vsub.f32 %v2350, %v2446
      %v2485 = vsub.f32 %v2352, %v2449
      %v2486 = vsub.f32 %v2355, %v2452
      %v2487 = vsub.f32 %v2357, %v2455
      %v2488 = vmul.f32 %v2456, 1.442695
      %v2489 = vpow.pop %v2488
      %v2490 = vmul.f32 %v2457, 1.442695
      %v2491 = vpow.pop %v2490
      %v2492 = vmul.f32 %v2458, 1.442695
      %v2493 = vpow.pop %v2492
      %v2494 = vmul.f32 %v2459, 1.442695
      %v2495 = vpow.pop %v2494
      %v2496 = vmul.f32 %v2460, 1.442695
      %v2497 = vpow.pop %v2496
      %v2498 = vmul.f32 %v2461, 1.442695
      %v2499 = vpow.pop %v2498
      %v2500 = vmul.f32 %v2462, 1.442695
      %v2501 = vpow.pop %v2500
      %v2502 = vmul.f32 %v2463, 1.442695
      %v2503 = vpow.pop %v2502
      %v2504 = vmul.f32 %v2464, 1.442695
      %v2505 = vpow.pop %v2504
      %v2506 = vmul.f32 %v2465, 1.442695
      %v2507 = vpow.pop %v2506
      %v2508 = vmul.f32 %v2466, 1.442695
      %v2509 = vpow.pop %v2508
      %v2510 = vmul.f32 %v2467, 1.442695
      %v2511 = vpow.pop %v2510
      %v2512 = vmul.f32 %v2468, 1.442695
      %v2513 = vpow.pop %v2512
      %v2514 = vmul.f32 %v2469, 1.442695
      %v2515 = vpow.pop %v2514
      %v2516 = vmul.f32 %v2470, 1.442695
      %v2517 = vpow.pop %v2516
      %v2518 = vmul.f32 %v2471, 1.442695
      %v2519 = vpow.pop %v2518
      %v2520 = vmul.f32 %v2472, 1.442695
      %v2521 = vpow.pop %v2520
      %v2522 = vmul.f32 %v2473, 1.442695
      %v2523 = vpow.pop %v2522
      %v2524 = vmul.f32 %v2474, 1.442695
      %v2525 = vpow.pop %v2524
      %v2526 = vmul.f32 %v2475, 1.442695
      %v2527 = vpow.pop %v2526
      %v2528 = vmul.f32 %v2476, 1.442695
      %v2529 = vpow.pop %v2528
      %v2530 = vmul.f32 %v2477, 1.442695
      %v2531 = vpow.pop %v2530
      %v2532 = vmul.f32 %v2478, 1.442695
      %v2533 = vpow.pop %v2532
      %v2534 = vmul.f32 %v2479, 1.442695
      %v2535 = vpow.pop %v2534
      %v2536 = vmul.f32 %v2480, 1.442695
      %v2537 = vpow.pop %v2536
      %v2538 = vmul.f32 %v2481, 1.442695
      %v2539 = vpow.pop %v2538
      %v2540 = vmul.f32 %v2482, 1.442695
      %v2541 = vpow.pop %v2540
      %v2542 = vmul.f32 %v2483, 1.442695
      %v2543 = vpow.pop %v2542
      %v2544 = vmul.f32 %v2484, 1.442695
      %v2545 = vpow.pop %v2544
      %v2546 = vmul.f32 %v2485, 1.442695
      %v2547 = vpow.pop %v2546
      %v2548 = vmul.f32 %v2486, 1.442695
      %v2549 = vpow.pop %v2548
      %v2550 = vmul.f32 %v2487, 1.442695
      %v2551 = vpow.pop %v2550
      %v2552 = vsel %vm2359, %v2489, 0.0
      %2553 = vadd.xlane.f32.xlu0 %v2552
      %v2554 = vpop.xlane.xlu0 %2553
      %v2555 = vsel %vm2359, %v2491, 0.0
      %2556 = vadd.xlane.f32.xlu0 %v2555
      %v2557 = vpop.xlane.xlu0 %2556
      %v2558 = vsel %vm2359, %v2493, 0.0
      %2559 = vadd.xlane.f32.xlu0 %v2558
      %v2560 = vpop.xlane.xlu0 %2559
      %v2561 = vsel %vm2359, %v2495, 0.0
      %2562 = vadd.xlane.f32.xlu0 %v2561
      %v2563 = vpop.xlane.xlu0 %2562
      %v2564 = vsel %vm2359, %v2497, 0.0
      %2565 = vadd.xlane.f32.xlu0 %v2564
      %v2566 = vpop.xlane.xlu0 %2565
      %v2567 = vsel %vm2359, %v2499, 0.0
      %2568 = vadd.xlane.f32.xlu0 %v2567
      %v2569 = vpop.xlane.xlu0 %2568
      %v2570 = vsel %vm2359, %v2501, 0.0
      %2571 = vadd.xlane.f32.xlu0 %v2570
      %v2572 = vpop.xlane.xlu0 %2571
      %v2573 = vsel %vm2359, %v2503, 0.0
      %2574 = vadd.xlane.f32.xlu0 %v2573
      %v2575 = vpop.xlane.xlu0 %2574
      %v2576 = vsel %vm2359, %v2505, 0.0
      %2577 = vadd.xlane.f32.xlu0 %v2576
      %v2578 = vpop.xlane.xlu0 %2577
      %v2579 = vsel %vm2359, %v2507, 0.0
      %2580 = vadd.xlane.f32.xlu0 %v2579
      %v2581 = vpop.xlane.xlu0 %2580
      %v2582 = vsel %vm2359, %v2509, 0.0
      %2583 = vadd.xlane.f32.xlu0 %v2582
      %v2584 = vpop.xlane.xlu0 %2583
      %v2585 = vsel %vm2359, %v2511, 0.0
      %2586 = vadd.xlane.f32.xlu0 %v2585
      %v2587 = vpop.xlane.xlu0 %2586
      %v2588 = vsel %vm2359, %v2513, 0.0
      %2589 = vadd.xlane.f32.xlu0 %v2588
      %v2590 = vpop.xlane.xlu0 %2589
      %v2591 = vsel %vm2359, %v2515, 0.0
      %2592 = vadd.xlane.f32.xlu0 %v2591
      %v2593 = vpop.xlane.xlu0 %2592
      %v2594 = vsel %vm2359, %v2517, 0.0
      %2595 = vadd.xlane.f32.xlu0 %v2594
      %v2596 = vpop.xlane.xlu0 %2595
      %v2597 = vsel %vm2359, %v2519, 0.0
      %2598 = vadd.xlane.f32.xlu0 %v2597
      %v2599 = vpop.xlane.xlu0 %2598
      %v2600 = vsel %vm2359, %v2521, 0.0
      %2601 = vadd.xlane.f32.xlu0 %v2600
      %v2602 = vpop.xlane.xlu0 %2601
      %v2603 = vsel %vm2359, %v2523, 0.0
      %2604 = vadd.xlane.f32.xlu0 %v2603
      %v2605 = vpop.xlane.xlu0 %2604
      %v2606 = vsel %vm2359, %v2525, 0.0
      %2607 = vadd.xlane.f32.xlu0 %v2606
      %v2608 = vpop.xlane.xlu0 %2607
      %v2609 = vsel %vm2359, %v2527, 0.0
      %2610 = vadd.xlane.f32.xlu0 %v2609
      %v2611 = vpop.xlane.xlu0 %2610
      %v2612 = vsel %vm2359, %v2529, 0.0
      %2613 = vadd.xlane.f32.xlu0 %v2612
      %v2614 = vpop.xlane.xlu0 %2613
      %v2615 = vsel %vm2359, %v2531, 0.0
      %2616 = vadd.xlane.f32.xlu0 %v2615
      %v2617 = vpop.xlane.xlu0 %2616
      %v2618 = vsel %vm2359, %v2533, 0.0
      %2619 = vadd.xlane.f32.xlu0 %v2618
      %v2620 = vpop.xlane.xlu0 %2619
      %v2621 = vsel %vm2359, %v2535, 0.0
      %2622 = vadd.xlane.f32.xlu0 %v2621
      %v2623 = vpop.xlane.xlu0 %2622
      %v2624 = vsel %vm2359, %v2537, 0.0
      %2625 = vadd.xlane.f32.xlu0 %v2624
      %v2626 = vpop.xlane.xlu0 %2625
      %v2627 = vsel %vm2359, %v2539, 0.0
      %2628 = vadd.xlane.f32.xlu0 %v2627
      %v2629 = vpop.xlane.xlu0 %2628
      %v2630 = vsel %vm2359, %v2541, 0.0
      %2631 = vadd.xlane.f32.xlu0 %v2630
      %v2632 = vpop.xlane.xlu0 %2631
      %v2633 = vsel %vm2359, %v2543, 0.0
      %2634 = vadd.xlane.f32.xlu0 %v2633
      %v2635 = vpop.xlane.xlu0 %2634
      %v2636 = vsel %vm2359, %v2545, 0.0
      %2637 = vadd.xlane.f32.xlu0 %v2636
      %v2638 = vpop.xlane.xlu0 %2637
      %v2639 = vsel %vm2359, %v2547, 0.0
      %2640 = vadd.xlane.f32.xlu0 %v2639
      %v2641 = vpop.xlane.xlu0 %2640
      %v2642 = vsel %vm2359, %v2549, 0.0
      %2643 = vadd.xlane.f32.xlu0 %v2642
      %v2644 = vpop.xlane.xlu0 %2643
      %v2645 = vsel %vm2359, %v2551, 0.0
      %2646 = vadd.xlane.f32.xlu0 %v2645
      %v2647 = vpop.xlane.xlu0 %2646
      %v2648 = vlog2.pop %v2554
      %v2649 = vmul.f32 %v2648, 0.6931472
      %v2650 = vlog2.pop %v2557
      %v2651 = vmul.f32 %v2650, 0.6931472
      %v2652 = vlog2.pop %v2560
      %v2653 = vmul.f32 %v2652, 0.6931472
      %v2654 = vlog2.pop %v2563
      %v2655 = vmul.f32 %v2654, 0.6931472
      %v2656 = vlog2.pop %v2566
      %v2657 = vmul.f32 %v2656, 0.6931472
      %v2658 = vlog2.pop %v2569
      %v2659 = vmul.f32 %v2658, 0.6931472
      %v2660 = vlog2.pop %v2572
      %v2661 = vmul.f32 %v2660, 0.6931472
      %v2662 = vlog2.pop %v2575
      %v2663 = vmul.f32 %v2662, 0.6931472
      %v2664 = vlog2.pop %v2578
      %v2665 = vmul.f32 %v2664, 0.6931472
      %v2666 = vlog2.pop %v2581
      %v2667 = vmul.f32 %v2666, 0.6931472
      %v2668 = vlog2.pop %v2584
      %v2669 = vmul.f32 %v2668, 0.6931472
      %v2670 = vlog2.pop %v2587
      %v2671 = vmul.f32 %v2670, 0.6931472
      %v2672 = vlog2.pop %v2590
      %v2673 = vmul.f32 %v2672, 0.6931472
      %v2674 = vlog2.pop %v2593
      %v2675 = vmul.f32 %v2674, 0.6931472
      %v2676 = vlog2.pop %v2596
      %v2677 = vmul.f32 %v2676, 0.6931472
      %v2678 = vlog2.pop %v2599
      %v2679 = vmul.f32 %v2678, 0.6931472
      %v2680 = vlog2.pop %v2602
      %v2681 = vmul.f32 %v2680, 0.6931472
      %v2682 = vlog2.pop %v2605
      %v2683 = vmul.f32 %v2682, 0.6931472
      %v2684 = vlog2.pop %v2608
      %v2685 = vmul.f32 %v2684, 0.6931472
      %v2686 = vlog2.pop %v2611
      %v2687 = vmul.f32 %v2686, 0.6931472
      %v2688 = vlog2.pop %v2614
      %v2689 = vmul.f32 %v2688, 0.6931472
      %v2690 = vlog2.pop %v2617
      %v2691 = vmul.f32 %v2690, 0.6931472
      %v2692 = vlog2.pop %v2620
      %v2693 = vmul.f32 %v2692, 0.6931472
      %v2694 = vlog2.pop %v2623
      %v2695 = vmul.f32 %v2694, 0.6931472
      %v2696 = vlog2.pop %v2626
      %v2697 = vmul.f32 %v2696, 0.6931472
      %v2698 = vlog2.pop %v2629
      %v2699 = vmul.f32 %v2698, 0.6931472
      %v2700 = vlog2.pop %v2632
      %v2701 = vmul.f32 %v2700, 0.6931472
      %v2702 = vlog2.pop %v2635
      %v2703 = vmul.f32 %v2702, 0.6931472
      %v2704 = vlog2.pop %v2638
      %v2705 = vmul.f32 %v2704, 0.6931472
      %v2706 = vlog2.pop %v2641
      %v2707 = vmul.f32 %v2706, 0.6931472
      %v2708 = vlog2.pop %v2644
      %v2709 = vmul.f32 %v2708, 0.6931472
      %v2710 = vlog2.pop %v2647
      %v2711 = vmul.f32 %v2710, 0.6931472
      %v2712 = vsub.f32 %v2456, %v2649
      %v2713 = vsub.f32 %v2457, %v2651
      %v2714 = vsub.f32 %v2458, %v2653
      %v2715 = vsub.f32 %v2459, %v2655
      %v2716 = vsub.f32 %v2460, %v2657
      %v2717 = vsub.f32 %v2461, %v2659
      %v2718 = vsub.f32 %v2462, %v2661
      %v2719 = vsub.f32 %v2463, %v2663
      %v2720 = vsub.f32 %v2464, %v2665
      %v2721 = vsub.f32 %v2465, %v2667
      %v2722 = vsub.f32 %v2466, %v2669
      %v2723 = vsub.f32 %v2467, %v2671
      %v2724 = vsub.f32 %v2468, %v2673
      %v2725 = vsub.f32 %v2469, %v2675
      %v2726 = vsub.f32 %v2470, %v2677
      %v2727 = vsub.f32 %v2471, %v2679
      %v2728 = vsub.f32 %v2472, %v2681
      %v2729 = vsub.f32 %v2473, %v2683
      %v2730 = vsub.f32 %v2474, %v2685
      %v2731 = vsub.f32 %v2475, %v2687
      %v2732 = vsub.f32 %v2476, %v2689
      %v2733 = vsub.f32 %v2477, %v2691
      %v2734 = vsub.f32 %v2478, %v2693
      %v2735 = vsub.f32 %v2479, %v2695
      %v2736 = vsub.f32 %v2480, %v2697
      %v2737 = vsub.f32 %v2481, %v2699
      %v2738 = vsub.f32 %v2482, %v2701
      %v2739 = vsub.f32 %v2483, %v2703
      %v2740 = vsub.f32 %v2484, %v2705
      %v2741 = vsub.f32 %v2485, %v2707
      %v2742 = vsub.f32 %v2486, %v2709
      %v2743 = vsub.f32 %v2487, %v2711
      %2744 = vst.msk [vmem:[%s337] sm:$0xff] %vm2359, %v2712
      %2745 = vst.msk [vmem:[%s337 + $0x8] sm:$0xff] %vm2359, %v2713
      %2746 = vst.msk [vmem:[%s337 + $0x10] sm:$0xff] %vm2359, %v2714
      %2747 = vst.msk [vmem:[%s337 + $0x18] sm:$0xff] %vm2359, %v2715
      %2748 = vst.msk [vmem:[%s337 + $0x20] sm:$0xff] %vm2359, %v2716
      %2749 = vst.msk [vmem:[%s337 + $0x28] sm:$0xff] %vm2359, %v2717
      %2750 = vst.msk [vmem:[%s337 + $0x30] sm:$0xff] %vm2359, %v2718
      %2751 = vst.msk [vmem:[%s337 + $0x38] sm:$0xff] %vm2359, %v2719
      %2752 = vst.msk [vmem:[%s337 + $0x40] sm:$0xff] %vm2359, %v2720
      %2753 = vst.msk [vmem:[%s337 + $0x48] sm:$0xff] %vm2359, %v2721
      %2754 = vst.msk [vmem:[%s337 + $0x50] sm:$0xff] %vm2359, %v2722
      %2755 = vst.msk [vmem:[%s337 + $0x58] sm:$0xff] %vm2359, %v2723
      %2756 = vst.msk [vmem:[%s337 + $0x60] sm:$0xff] %vm2359, %v2724
      %2757 = vst.msk [vmem:[%s337 + $0x68] sm:$0xff] %vm2359, %v2725
      %2758 = vst.msk [vmem:[%s337 + $0x70] sm:$0xff] %vm2359, %v2726
      %2759 = vst.msk [vmem:[%s337 + $0x78] sm:$0xff] %vm2359, %v2727
      %2760 = vst.msk [vmem:[%s337 + $0x80] sm:$0xff] %vm2359, %v2728
      %2761 = vst.msk [vmem:[%s337 + $0x88] sm:$0xff] %vm2359, %v2729
      %2762 = vst.msk [vmem:[%s337 + $0x90] sm:$0xff] %vm2359, %v2730
      %2763 = vst.msk [vmem:[%s337 + $0x98] sm:$0xff] %vm2359, %v2731
      %2764 = vst.msk [vmem:[%s337 + $0xa0] sm:$0xff] %vm2359, %v2732
      %2765 = vst.msk [vmem:[%s337 + $0xa8] sm:$0xff] %vm2359, %v2733
      %2766 = vst.msk [vmem:[%s337 + $0xb0] sm:$0xff] %vm2359, %v2734
      %2767 = vst.msk [vmem:[%s337 + $0xb8] sm:$0xff] %vm2359, %v2735
      %2768 = vst.msk [vmem:[%s337 + $0xc0] sm:$0xff] %vm2359, %v2736
      %2769 = vst.msk [vmem:[%s337 + $0xc8] sm:$0xff] %vm2359, %v2737
      %2770 = vst.msk [vmem:[%s337 + $0xd0] sm:$0xff] %vm2359, %v2738
      %2771 = vst.msk [vmem:[%s337 + $0xd8] sm:$0xff] %vm2359, %v2739
      %2772 = vst.msk [vmem:[%s337 + $0xe0] sm:$0xff] %vm2359, %v2740
      %2773 = vst.msk [vmem:[%s337 + $0xe8] sm:$0xff] %vm2359, %v2741
      %2774 = vst.msk [vmem:[%s337 + $0xf0] sm:$0xff] %vm2359, %v2742
      %2775 = vst.msk [vmem:[%s337 + $0xf8] sm:$0xff] %vm2359, %v2743
      %s2776 = smul.u32 32, %s20
      %p2777 = scmp.lt.s32.totalorder %s2776, 63
      %s2778 = scalar_select %p2777, %s2776, 63
      %s2779 = smul.addr %s2778, 8
      %s2780 = scalar_lea.vmem %s9, %s2779
      // Predicated region
      $region57: #{tpu_custom_call.1} parent=55 // pred_check
        %p2781 = pneg %p232
      $region58: #{tpu_custom_call.1} parent=55 // pred_check_branch
        %2783 = sbr.rel (%p2781) target = $region60
      $region59: #{tpu_custom_call.1} parent=55 // pred_region
        %s2784 = smul.u32 32, %s20
      $region60: #{tpu_custom_call.1} parent=55 // pred_fallthru
        _
    $region56: #{tpu_custom_call.1} parent=5 // pred_fallthru
      _
    %p2785 = scmp.le.s32.totalorder 2, %s15
    // Predicated region
    $region61: #{tpu_custom_call.1} parent=5 // pred_check
      %p2786 = pneg %p2785
    $region62: #{tpu_custom_call.1} parent=5 // pred_check_branch
      %2788 = sbr.rel (%p2786) target = $region64
    $region63: #{tpu_custom_call.1} parent=5 // pred_region
      %s2789 = ssub.s32 %s15, 2
      // Predicated region
      $region65: #{tpu_custom_call.1} parent=63 // pred_check
        %p2790 = pneg %p238
      $region66: #{tpu_custom_call.1} parent=63 // pred_check_branch
        %2792 = sbr.rel (%p2790) target = $region68
      $region67: #{tpu_custom_call.1} parent=63 // pred_region
        %s2793 = smul.u32 32, %s21
        %p2794 = scmp.lt.s32.totalorder %s2793, 63
        %s2795 = scalar_select %p2794, %s2793, 63
        %s2796 = smul.addr %s2795, 8
        %s2797 = scalar_lea.vmem %s9, %s2796
      $region68: #{tpu_custom_call.1} parent=63 // pred_fallthru
        _
    $region64: #{tpu_custom_call.1} parent=5 // pred_fallthru
      _
  $region6: #{tpu_custom_call.1} parent=0 // loop_footer
    %s19 = sadd.s32 1, %s15
  $region7: #{tpu_custom_call.1} parent=0 // loop_footer_branch
    %14 = sbr.rel target = $region3
  $region8: #{tpu_custom_call.1} parent=0 // loop_exit
    _

</llo_original>
